<compile_context>
chip_gen: v7x
topology: tpu7x:2x2x1
jax: 0.10.0
libtpu: 0.0.40
codegen_flags: <defaults>
</compile_context>

<pallas_src>
import functools
import numpy as np
import jax
import jax.numpy as jnp
from jax import lax
from jax.experimental import pallas as pl
from jax.experimental.pallas import tpu as pltpu


def _downsample_unit_kernel(W, Wo, x_ref, pmask_ref, cmask_ref, wfold_ref,
                            b1_ref, w4_ref, b4_ref, dsel_ref, out_ref):
    f32 = jnp.float32
    C = x_ref.shape[0]
    Lin = x_ref.shape[1]        # NB * H * W   (batch packed along lanes)
    Lout = out_ref.shape[1]     # NB * Ho * Wo

    def shifted(v, off, length):
        # shifted(v, off)[:, l] = v[:, l + off]; wrapped lanes are masked by the caller.
        if off == 0:
            return v
        return pltpu.roll(v, shift=(-off) % length, axis=1)

    # inplace ReLU is applied to x before any branch of the module.
    xr = jnp.maximum(x_ref[...].astype(f32), 0.0)            # (C, NB*H*W)

    mL = pmask_ref[0:1, :]      # q-1 inside the image
    mR = pmask_ref[1:2, :]      # q+1 inside the image
    mU = pmask_ref[2:3, :]      # p-1 inside the image
    mD = pmask_ref[3:4, :]      # p+1 inside the image

    # 3x3 / stride-2 / pad-1 max & sum pooling evaluated at every (p, q).  Out-of-range
    # (and cross-image) taps are zero-masked — valid for the max because relu(x) >= 0 and
    # every window contains its real centre; exact for the sum (zero padding).
    tL = mL * shifted(xr, -1, Lin)
    tR = mR * shifted(xr, 1, Lin)
    hmax = jnp.maximum(jnp.maximum(tL, tR), xr)
    hsum = tL + tR + xr
    vmax = jnp.maximum(jnp.maximum(mU * shifted(hmax, -W, Lin),
                                   mD * shifted(hmax, W, Lin)), hmax)
    vsum = mU * shifted(hsum, -W, Lin) + mD * shifted(hsum, W, Lin) + hsum

    # Decimate FIRST: one fused one-hot matmul moves both branches onto the stride-2
    # output grid.  precision=HIGHEST keeps the 0/1 selection exact (bit-exact maxpool).
    stacked = jnp.concatenate([vmax, vsum], axis=0)          # (2C, NB*H*W)
    dec = jnp.dot(stacked, dsel_ref[...],
                  precision=lax.Precision.HIGHEST,
                  preferred_element_type=f32)                # (2C, NB*Ho*Wo)
    mp = dec[:C, :]             # maxpool(relu(x))
    sp = dec[C:, :]             # 3x3 sum-pool on the output grid (= 9 * avgpool)

    # Depthwise 3x3 conv1 (bn1 scale and the 1/9 avgpool divisor folded into the taps),
    # evaluated directly on the decimated grid: 8 lane rolls of +-1 / +-Wo, per-tap
    # zero-pad masks, rank-1 per-channel coefficients.
    acc = wfold_ref[:, 4:5] * sp                             # centre tap, always valid
    for dy in range(3):
        for dx in range(3):
            if dy == 1 and dx == 1:
                continue
            k = dy * 3 + dx
            off = (dy - 1) * Wo + (dx - 1)
            tap = cmask_ref[k:k + 1, :] * shifted(sp, off, Lout)
            acc = acc + wfold_ref[:, k:k + 1] * tap

    z = jnp.maximum(acc + b1_ref[...], 0.0)                  # bn1 bias + ReLU

    # 1x1 conv4 with the bn4 scale folded in.  For small C a K=M=C matmul is pure MXU
    # fill/drain latency, so use unrolled VPU broadcast-FMAs; otherwise a real dot.
    if C <= 32:
        y = w4_ref[:, 0:1] * z[0:1, :]
        for i in range(1, C):
            y = y + w4_ref[:, i:i + 1] * z[i:i + 1, :]
    else:
        y = jnp.dot(w4_ref[...], z,
                    precision=lax.Precision.HIGHEST,
                    preferred_element_type=f32)
    y = jnp.maximum(y + b4_ref[...], 0.0)                    # bn4 bias + ReLU

    out_ref[...] = (mp + y).astype(out_ref.dtype)


def _pick_nb(N, C, HW, HoWo, budget_bytes=8 << 20):
    """Images per grid step: largest divisor of N whose per-step VMEM footprint fits."""
    fits = []
    for nb in range(1, N + 1):
        if N % nb:
            continue
        fp = 4 * (2 * C * nb * HW            # x block, double-buffered
                  + 2 * C * nb * HoWo        # out block, double-buffered
                  + 2 * nb * nb * HW * HoWo  # decimation one-hot (conservative x2)
                  + 2 * 4 * nb * HW          # pooling masks
                  + 2 * 9 * nb * HoWo        # conv1 pad masks
                  + 8 * C * nb * HW)         # live intermediate values (slack)
        if fp <= budget_bytes:
            fits.append(nb)
    if not fits:
        return 1
    best = max(fits)
    # If the biggest block leaves a single grid step, prefer a lane-dense option that keeps
    # >= 2 steps so v7x's two TensorCores both get work.
    multi = [nb for nb in fits if nb * HoWo >= 128 and N // nb >= 2]
    if N // best < 2 and multi:
        best = max(multi)
    return best


def pz_downsample_unit(x, params):
    """x: (N, C, H, W) float.  Returns (N, C, Ho, Wo) with Ho/Wo from k=3, s=2, p=1."""
    N, C, H, W = x.shape
    Ho = (H + 2 - 3) // 2 + 1
    Wo = (W + 2 - 3) // 2 + 1
    HW, HoWo = H * W, Ho * Wo
    # geometry guard: every selected centre and conv tap stays inside the image
    assert H >= 3 and W >= 3 and 2 * (Ho - 1) <= H - 1 and 2 * (Wo - 1) <= W - 1

    NB = _pick_nb(N, C, HW, HoWo)
    G = N // NB

    eps = 1e-5
    s1 = params["bn1_gamma"] / jnp.sqrt(params["bn1_var"] + eps)
    b1 = params["bn1_beta"] - params["bn1_mean"] * s1
    s4 = params["bn4_gamma"] / jnp.sqrt(params["bn4_var"] + eps)
    b4 = params["bn4_beta"] - params["bn4_mean"] * s4

    # per-image flattened coordinates (lane within one image = p*W + q)
    p = np.repeat(np.arange(H), W)
    q = np.tile(np.arange(W), H)
    pmask = np.stack([(q >= 1), (q <= W - 2), (p >= 1), (p <= H - 2)]).astype(np.float32)
    pmask = np.tile(pmask, (1, NB))                          # batch packed along lanes

    # conv1 zero-padding tap masks, in decimated (Ho, Wo) coordinates
    ii = np.repeat(np.arange(Ho), Wo)
    jj = np.tile(np.arange(Wo), Ho)
    cmask = np.zeros((9, HoWo), np.float32)
    for dy in range(3):
        for dx in range(3):
            ok = ((ii + dy - 1 >= 0) & (ii + dy - 1 <= Ho - 1) &
                  (jj + dx - 1 >= 0) & (jj + dx - 1 <= Wo - 1))
            cmask[dy * 3 + dx] = ok.astype(np.float32)
    cmask = np.tile(cmask, (1, NB))

    # stride-2 decimation one-hot: lane b*HW + (2i)*W + 2j  ->  lane b*HoWo + i*Wo + j
    dsel1 = np.zeros((HW, HoWo), np.float32)
    dsel1[2 * ii * W + 2 * jj, ii * Wo + jj] = 1.0
    dsel = np.kron(np.eye(NB, dtype=np.float32), dsel1)      # block-diag over lane-packed images

    # fold 1/9 (avgpool) and bn1 scale into the depthwise taps; bn4 scale into conv4
    wfold = (params["conv1_w"].reshape(C, 9) * (s1[:, None] / 9.0)).astype(jnp.float32)
    w4s = (s4[:, None] * params["conv4_w"]).astype(jnp.float32)
    b1c = b1[:, None].astype(jnp.float32)
    b4c = b4[:, None].astype(jnp.float32)

    # batch-in-lanes layout (layout plumbing only): x_in[g, c, b*HW + s] = x[g*NB + b, c, s]
    x_in = x.reshape(G, NB, C, HW).transpose(0, 2, 1, 3).reshape(G, C, NB * HW)

    kernel = functools.partial(_downsample_unit_kernel, W, Wo)
    out = pl.pallas_call(
        kernel,
        out_shape=jax.ShapeDtypeStruct((G, C, NB * HoWo), x.dtype),
        grid=(G,),
        in_specs=[
            pl.BlockSpec((None, C, NB * HW), lambda g: (g, 0, 0)),   # x (per grid step)
            pl.BlockSpec((4, NB * HW), lambda g: (0, 0)),            # pooling boundary masks
            pl.BlockSpec((9, NB * HoWo), lambda g: (0, 0)),          # conv1 zero-pad masks
            pl.BlockSpec((C, 9), lambda g: (0, 0)),                  # folded conv1 taps (rank-1)
            pl.BlockSpec((C, 1), lambda g: (0, 0)),                  # bn1 bias
            pl.BlockSpec((C, C), lambda g: (0, 0)),                  # bn4-scaled conv4
            pl.BlockSpec((C, 1), lambda g: (0, 0)),                  # bn4 bias
            pl.BlockSpec((NB * HW, NB * HoWo), lambda g: (0, 0)),    # stride-2 one-hot
        ],
        out_specs=pl.BlockSpec((None, C, NB * HoWo), lambda g: (g, 0, 0)),
        compiler_params=pltpu.CompilerParams(
            dimension_semantics=("parallel",),
            vmem_limit_bytes=32 * 1024 * 1024),
    )(x_in, jnp.asarray(pmask), jnp.asarray(cmask), wfold, b1c, w4s, b4c,
      jnp.asarray(dsel))

    return out.reshape(G, C, NB, HoWo).transpose(0, 2, 1, 3).reshape(N, C, Ho, Wo)


def reference_forward(x, params):
    """Pure-JAX reference of the intended pz_DownsampleUnit forward (eval-mode BN)."""
    N, C, H, W = x.shape
    eps = 1e-5
    xr = jnp.maximum(x, 0.0)        # the inplace ReLU mutates x before pooling
    pad = [(0, 0), (0, 0), (1, 1), (1, 1)]
    mp = lax.reduce_window(xr, -jnp.inf, lax.max, (1, 1, 3, 3), (1, 1, 2, 2), pad)
    ap = lax.reduce_window(xr, 0.0, lax.add, (1, 1, 3, 3), (1, 1, 2, 2), pad) / 9.0
    dw = lax.conv_general_dilated(
        ap, params["conv1_w"].reshape(C, 1, 3, 3), (1, 1), [(1, 1), (1, 1)],
        dimension_numbers=("NCHW", "OIHW", "NCHW"), feature_group_count=C)
    s1 = params["bn1_gamma"] / jnp.sqrt(params["bn1_var"] + eps)
    b1 = params["bn1_beta"] - params["bn1_mean"] * s1
    z = jnp.maximum(dw * s1[None, :, None, None] + b1[None, :, None, None], 0.0)
    pw = lax.conv_general_dilated(
        z, params["conv4_w"].reshape(C, C, 1, 1), (1, 1), [(0, 0), (0, 0)],
        dimension_numbers=("NCHW", "OIHW", "NCHW"))
    s4 = params["bn4_gamma"] / jnp.sqrt(params["bn4_var"] + eps)
    b4 = params["bn4_beta"] - params["bn4_mean"] * s4
    y = jnp.maximum(pw * s4[None, :, None, None] + b4[None, :, None, None], 0.0)
    return mp + y


if __name__ == "__main__":
    key = jax.random.PRNGKey(0)
    ks = jax.random.split(key, 12)
    N, C, H, W = 2, 4, 16, 16            # _in == _out == 4 (required for the residual add)
    x = jax.random.normal(ks[0], (N, C, H, W), jnp.float32)
    params = dict(
        conv1_w=0.5 * jax.random.normal(ks[1], (C, 3, 3), jnp.float32),   # depthwise (C,1,3,3)
        conv4_w=0.5 * jax.random.normal(ks[2], (C, C), jnp.float32),      # 1x1 (C_out,C_in)
        bn1_gamma=1.0 + 0.1 * jax.random.normal(ks[3], (C,), jnp.float32),
        bn1_beta=0.1 * jax.random.normal(ks[4], (C,), jnp.float32),
        bn1_mean=0.1 * jax.random.normal(ks[5], (C,), jnp.float32),
        bn1_var=0.5 + jnp.abs(jax.random.normal(ks[6], (C,), jnp.float32)),
        bn4_gamma=1.0 + 0.1 * jax.random.normal(ks[7], (C,), jnp.float32),
        bn4_beta=0.1 * jax.random.normal(ks[8], (C,), jnp.float32),
        bn4_mean=0.1 * jax.random.normal(ks[9], (C,), jnp.float32),
        bn4_var=0.5 + jnp.abs(jax.random.normal(ks[10], (C,), jnp.float32)),
    )

    out = jax.block_until_ready(pz_downsample_unit(x, params))
    ref = jax.block_until_ready(reference_forward(x, params))
    # exact 0/1 selection (HIGHEST) + f32 VPU everywhere else -> tight tolerance
    np.testing.assert_allclose(np.asarray(out), np.asarray(ref), rtol=1e-4, atol=1e-5)
    print("KERNEL_OK")
</pallas_src>

<mosaic_0001>
module attributes {stable_mosaic.version = 11 : i64} {
  func.func @_downsample_unit_kernel(%arg0: i32, %arg1: memref<1x4x512xf32, #tpu.memory_space<vmem>>, %arg2: memref<4x512xf32, #tpu.memory_space<vmem>>, %arg3: memref<9x128xf32, #tpu.memory_space<vmem>>, %arg4: memref<4x9xf32, #tpu.memory_space<vmem>>, %arg5: memref<4x1xf32, #tpu.memory_space<vmem>>, %arg6: memref<4x4xf32, #tpu.memory_space<vmem>>, %arg7: memref<4x1xf32, #tpu.memory_space<vmem>>, %arg8: memref<512x128xf32, #tpu.memory_space<vmem>>, %arg9: memref<1x4x128xf32, #tpu.memory_space<vmem>>) attributes {dimension_semantics = [#tpu.dimension_semantics<parallel>], iteration_bounds = array<i64: 1>, scalar_prefetch = 0 : i64, scratch_operands = 0 : i64, tpu.core_type = #tpu.core_type<tc>, window_params = [{transform_indices = @transform_0, window_bounds = array<i64: 1, 4, 512>}, {pipeline_mode = #tpu.pipeline_mode<synchronous>, transform_indices = @transform_1, window_bounds = array<i64: 4, 512>}, {pipeline_mode = #tpu.pipeline_mode<synchronous>, transform_indices = @transform_2, window_bounds = array<i64: 9, 128>}, {pipeline_mode = #tpu.pipeline_mode<synchronous>, transform_indices = @transform_3, window_bounds = array<i64: 4, 9>}, {pipeline_mode = #tpu.pipeline_mode<synchronous>, transform_indices = @transform_4, window_bounds = array<i64: 4, 1>}, {pipeline_mode = #tpu.pipeline_mode<synchronous>, transform_indices = @transform_5, window_bounds = array<i64: 4, 4>}, {pipeline_mode = #tpu.pipeline_mode<synchronous>, transform_indices = @transform_6, window_bounds = array<i64: 4, 1>}, {pipeline_mode = #tpu.pipeline_mode<synchronous>, transform_indices = @transform_7, window_bounds = array<i64: 512, 128>}, {transform_indices = @transform_8, window_bounds = array<i64: 1, 4, 128>}]} {
    %c0 = arith.constant 0 : index
    %c0_0 = arith.constant 0 : index
    %c0_1 = arith.constant 0 : index
    %0 = vector.load %arg1[%c0, %c0_0, %c0_1] : memref<1x4x512xf32, #tpu.memory_space<vmem>>, vector<1x4x512xf32>
    %1 = vector.shape_cast %0 : vector<1x4x512xf32> to vector<4x512xf32>
    %cst = arith.constant 0.000000e+00 : f32
    %2 = vector.broadcast %cst : f32 to vector<4x512xf32>
    %3 = arith.maximumf %1, %2 : vector<4x512xf32>
    %c0_2 = arith.constant 0 : index
    %c0_3 = arith.constant 0 : index
    %4 = vector.load %arg2[%c0_2, %c0_3] : memref<4x512xf32, #tpu.memory_space<vmem>>, vector<1x512xf32>
    %c1 = arith.constant 1 : index
    %c0_4 = arith.constant 0 : index
    %5 = vector.load %arg2[%c1, %c0_4] : memref<4x512xf32, #tpu.memory_space<vmem>>, vector<1x512xf32>
    %c2 = arith.constant 2 : index
    %c0_5 = arith.constant 0 : index
    %6 = vector.load %arg2[%c2, %c0_5] : memref<4x512xf32, #tpu.memory_space<vmem>>, vector<1x512xf32>
    %c3 = arith.constant 3 : index
    %c0_6 = arith.constant 0 : index
    %7 = vector.load %arg2[%c3, %c0_6] : memref<4x512xf32, #tpu.memory_space<vmem>>, vector<1x512xf32>
    %c1_i32 = arith.constant 1 : i32
    %8 = tpu.dynamic_rotate %3 by %c1_i32 dim 1 : vector<4x512xf32>, i32 -> vector<4x512xf32>
    %9 = vector.broadcast %4 : vector<1x512xf32> to vector<4x512xf32>
    %10 = arith.mulf %9, %8 : vector<4x512xf32>
    %c511_i32 = arith.constant 511 : i32
    %11 = tpu.dynamic_rotate %3 by %c511_i32 dim 1 : vector<4x512xf32>, i32 -> vector<4x512xf32>
    %12 = vector.broadcast %5 : vector<1x512xf32> to vector<4x512xf32>
    %13 = arith.mulf %12, %11 : vector<4x512xf32>
    %14 = arith.maximumf %10, %13 : vector<4x512xf32>
    %15 = arith.maximumf %14, %3 : vector<4x512xf32>
    %16 = arith.addf %10, %13 : vector<4x512xf32>
    %17 = arith.addf %16, %3 : vector<4x512xf32>
    %c16_i32 = arith.constant 16 : i32
    %18 = tpu.dynamic_rotate %15 by %c16_i32 dim 1 : vector<4x512xf32>, i32 -> vector<4x512xf32>
    %19 = vector.broadcast %6 : vector<1x512xf32> to vector<4x512xf32>
    %20 = arith.mulf %19, %18 : vector<4x512xf32>
    %c496_i32 = arith.constant 496 : i32
    %21 = tpu.dynamic_rotate %15 by %c496_i32 dim 1 : vector<4x512xf32>, i32 -> vector<4x512xf32>
    %22 = vector.broadcast %7 : vector<1x512xf32> to vector<4x512xf32>
    %23 = arith.mulf %22, %21 : vector<4x512xf32>
    %24 = arith.maximumf %20, %23 : vector<4x512xf32>
    %25 = arith.maximumf %24, %15 : vector<4x512xf32>
    %c16_i32_7 = arith.constant 16 : i32
    %26 = tpu.dynamic_rotate %17 by %c16_i32_7 dim 1 : vector<4x512xf32>, i32 -> vector<4x512xf32>
    %27 = vector.broadcast %6 : vector<1x512xf32> to vector<4x512xf32>
    %28 = arith.mulf %27, %26 : vector<4x512xf32>
    %c496_i32_8 = arith.constant 496 : i32
    %29 = tpu.dynamic_rotate %17 by %c496_i32_8 dim 1 : vector<4x512xf32>, i32 -> vector<4x512xf32>
    %30 = vector.broadcast %7 : vector<1x512xf32> to vector<4x512xf32>
    %31 = arith.mulf %30, %29 : vector<4x512xf32>
    %32 = arith.addf %28, %31 : vector<4x512xf32>
    %33 = arith.addf %32, %17 : vector<4x512xf32>
    %34 = tpu.concatenate %25, %33 in 0 : vector<4x512xf32>, vector<4x512xf32> -> vector<8x512xf32>
    %c0_9 = arith.constant 0 : index
    %c0_10 = arith.constant 0 : index
    %35 = vector.load %arg8[%c0_9, %c0_10] : memref<512x128xf32, #tpu.memory_space<vmem>>, vector<512x128xf32>
    %cst_11 = arith.constant dense<0.000000e+00> : vector<8x128xf32>
    %36 = tpu.matmul %34, %35, %cst_11 {dimension_numbers = #tpu.dot_dimension_numbers<[1], [0], [0], [1], [0, 0, 1, 1], [], []>, precision = #tpu.contract_precision<fp32>} : vector<8x512xf32>, vector<512x128xf32>, vector<8x128xf32> -> vector<8x128xf32>
    %37 = vector.extract_strided_slice %36 {offsets = [0, 0], sizes = [4, 128], strides = [1, 1]} : vector<8x128xf32> to vector<4x128xf32>
    %38 = vector.extract_strided_slice %36 {offsets = [4, 0], sizes = [4, 128], strides = [1, 1]} : vector<8x128xf32> to vector<4x128xf32>
    %c0_12 = arith.constant 0 : index
    %c4 = arith.constant 4 : index
    %39 = vector.load %arg4[%c0_12, %c4] : memref<4x9xf32, #tpu.memory_space<vmem>>, vector<4x1xf32>
    %40 = vector.broadcast %39 : vector<4x1xf32> to vector<4x128xf32>
    %41 = arith.mulf %40, %38 : vector<4x128xf32>
    %c0_13 = arith.constant 0 : index
    %c0_14 = arith.constant 0 : index
    %42 = vector.load %arg3[%c0_13, %c0_14] : memref<9x128xf32, #tpu.memory_space<vmem>>, vector<1x128xf32>
    %c9_i32 = arith.constant 9 : i32
    %43 = tpu.dynamic_rotate %38 by %c9_i32 dim 1 : vector<4x128xf32>, i32 -> vector<4x128xf32>
    %44 = vector.broadcast %42 : vector<1x128xf32> to vector<4x128xf32>
    %45 = arith.mulf %44, %43 : vector<4x128xf32>
    %c0_15 = arith.constant 0 : index
    %c0_16 = arith.constant 0 : index
    %46 = vector.load %arg4[%c0_15, %c0_16] : memref<4x9xf32, #tpu.memory_space<vmem>>, vector<4x1xf32>
    %47 = vector.broadcast %46 : vector<4x1xf32> to vector<4x128xf32>
    %48 = arith.mulf %47, %45 : vector<4x128xf32>
    %49 = arith.addf %41, %48 : vector<4x128xf32>
    %c1_17 = arith.constant 1 : index
    %c0_18 = arith.constant 0 : index
    %50 = vector.load %arg3[%c1_17, %c0_18] : memref<9x128xf32, #tpu.memory_space<vmem>>, vector<1x128xf32>
    %c8_i32 = arith.constant 8 : i32
    %51 = tpu.dynamic_rotate %38 by %c8_i32 dim 1 : vector<4x128xf32>, i32 -> vector<4x128xf32>
    %52 = vector.broadcast %50 : vector<1x128xf32> to vector<4x128xf32>
    %53 = arith.mulf %52, %51 : vector<4x128xf32>
    %c0_19 = arith.constant 0 : index
    %c1_20 = arith.constant 1 : index
    %54 = vector.load %arg4[%c0_19, %c1_20] : memref<4x9xf32, #tpu.memory_space<vmem>>, vector<4x1xf32>
    %55 = vector.broadcast %54 : vector<4x1xf32> to vector<4x128xf32>
    %56 = arith.mulf %55, %53 : vector<4x128xf32>
    %57 = arith.addf %49, %56 : vector<4x128xf32>
    %c2_21 = arith.constant 2 : index
    %c0_22 = arith.constant 0 : index
    %58 = vector.load %arg3[%c2_21, %c0_22] : memref<9x128xf32, #tpu.memory_space<vmem>>, vector<1x128xf32>
    %c7_i32 = arith.constant 7 : i32
    %59 = tpu.dynamic_rotate %38 by %c7_i32 dim 1 : vector<4x128xf32>, i32 -> vector<4x128xf32>
    %60 = vector.broadcast %58 : vector<1x128xf32> to vector<4x128xf32>
    %61 = arith.mulf %60, %59 : vector<4x128xf32>
    %c0_23 = arith.constant 0 : index
    %c2_24 = arith.constant 2 : index
    %62 = vector.load %arg4[%c0_23, %c2_24] : memref<4x9xf32, #tpu.memory_space<vmem>>, vector<4x1xf32>
    %63 = vector.broadcast %62 : vector<4x1xf32> to vector<4x128xf32>
    %64 = arith.mulf %63, %61 : vector<4x128xf32>
    %65 = arith.addf %57, %64 : vector<4x128xf32>
    %c3_25 = arith.constant 3 : index
    %c0_26 = arith.constant 0 : index
    %66 = vector.load %arg3[%c3_25, %c0_26] : memref<9x128xf32, #tpu.memory_space<vmem>>, vector<1x128xf32>
    %c1_i32_27 = arith.constant 1 : i32
    %67 = tpu.dynamic_rotate %38 by %c1_i32_27 dim 1 : vector<4x128xf32>, i32 -> vector<4x128xf32>
    %68 = vector.broadcast %66 : vector<1x128xf32> to vector<4x128xf32>
    %69 = arith.mulf %68, %67 : vector<4x128xf32>
    %c0_28 = arith.constant 0 : index
    %c3_29 = arith.constant 3 : index
    %70 = vector.load %arg4[%c0_28, %c3_29] : memref<4x9xf32, #tpu.memory_space<vmem>>, vector<4x1xf32>
    %71 = vector.broadcast %70 : vector<4x1xf32> to vector<4x128xf32>
    %72 = arith.mulf %71, %69 : vector<4x128xf32>
    %73 = arith.addf %65, %72 : vector<4x128xf32>
    %c5 = arith.constant 5 : index
    %c0_30 = arith.constant 0 : index
    %74 = vector.load %arg3[%c5, %c0_30] : memref<9x128xf32, #tpu.memory_space<vmem>>, vector<1x128xf32>
    %c127_i32 = arith.constant 127 : i32
    %75 = tpu.dynamic_rotate %38 by %c127_i32 dim 1 : vector<4x128xf32>, i32 -> vector<4x128xf32>
    %76 = vector.broadcast %74 : vector<1x128xf32> to vector<4x128xf32>
    %77 = arith.mulf %76, %75 : vector<4x128xf32>
    %c0_31 = arith.constant 0 : index
    %c5_32 = arith.constant 5 : index
    %78 = vector.load %arg4[%c0_31, %c5_32] : memref<4x9xf32, #tpu.memory_space<vmem>>, vector<4x1xf32>
    %79 = vector.broadcast %78 : vector<4x1xf32> to vector<4x128xf32>
    %80 = arith.mulf %79, %77 : vector<4x128xf32>
    %81 = arith.addf %73, %80 : vector<4x128xf32>
    %c6 = arith.constant 6 : index
    %c0_33 = arith.constant 0 : index
    %82 = vector.load %arg3[%c6, %c0_33] : memref<9x128xf32, #tpu.memory_space<vmem>>, vector<1x128xf32>
    %c121_i32 = arith.constant 121 : i32
    %83 = tpu.dynamic_rotate %38 by %c121_i32 dim 1 : vector<4x128xf32>, i32 -> vector<4x128xf32>
    %84 = vector.broadcast %82 : vector<1x128xf32> to vector<4x128xf32>
    %85 = arith.mulf %84, %83 : vector<4x128xf32>
    %c0_34 = arith.constant 0 : index
    %c6_35 = arith.constant 6 : index
    %86 = vector.load %arg4[%c0_34, %c6_35] : memref<4x9xf32, #tpu.memory_space<vmem>>, vector<4x1xf32>
    %87 = vector.broadcast %86 : vector<4x1xf32> to vector<4x128xf32>
    %88 = arith.mulf %87, %85 : vector<4x128xf32>
    %89 = arith.addf %81, %88 : vector<4x128xf32>
    %c7 = arith.constant 7 : index
    %c0_36 = arith.constant 0 : index
    %90 = vector.load %arg3[%c7, %c0_36] : memref<9x128xf32, #tpu.memory_space<vmem>>, vector<1x128xf32>
    %c120_i32 = arith.constant 120 : i32
    %91 = tpu.dynamic_rotate %38 by %c120_i32 dim 1 : vector<4x128xf32>, i32 -> vector<4x128xf32>
    %92 = vector.broadcast %90 : vector<1x128xf32> to vector<4x128xf32>
    %93 = arith.mulf %92, %91 : vector<4x128xf32>
    %c0_37 = arith.constant 0 : index
    %c7_38 = arith.constant 7 : index
    %94 = vector.load %arg4[%c0_37, %c7_38] : memref<4x9xf32, #tpu.memory_space<vmem>>, vector<4x1xf32>
    %95 = vector.broadcast %94 : vector<4x1xf32> to vector<4x128xf32>
    %96 = arith.mulf %95, %93 : vector<4x128xf32>
    %97 = arith.addf %89, %96 : vector<4x128xf32>
    %c8 = arith.constant 8 : index
    %c0_39 = arith.constant 0 : index
    %98 = vector.load %arg3[%c8, %c0_39] : memref<9x128xf32, #tpu.memory_space<vmem>>, vector<1x128xf32>
    %c119_i32 = arith.constant 119 : i32
    %99 = tpu.dynamic_rotate %38 by %c119_i32 dim 1 : vector<4x128xf32>, i32 -> vector<4x128xf32>
    %100 = vector.broadcast %98 : vector<1x128xf32> to vector<4x128xf32>
    %101 = arith.mulf %100, %99 : vector<4x128xf32>
    %c0_40 = arith.constant 0 : index
    %c8_41 = arith.constant 8 : index
    %102 = vector.load %arg4[%c0_40, %c8_41] : memref<4x9xf32, #tpu.memory_space<vmem>>, vector<4x1xf32>
    %103 = vector.broadcast %102 : vector<4x1xf32> to vector<4x128xf32>
    %104 = arith.mulf %103, %101 : vector<4x128xf32>
    %105 = arith.addf %97, %104 : vector<4x128xf32>
    %c0_42 = arith.constant 0 : index
    %c0_43 = arith.constant 0 : index
    %106 = vector.load %arg5[%c0_42, %c0_43] : memref<4x1xf32, #tpu.memory_space<vmem>>, vector<4x1xf32>
    %107 = vector.broadcast %106 : vector<4x1xf32> to vector<4x128xf32>
    %108 = arith.addf %105, %107 : vector<4x128xf32>
    %cst_44 = arith.constant 0.000000e+00 : f32
    %109 = vector.broadcast %cst_44 : f32 to vector<4x128xf32>
    %110 = arith.maximumf %108, %109 : vector<4x128xf32>
    %c0_45 = arith.constant 0 : index
    %c0_46 = arith.constant 0 : index
    %111 = vector.load %arg6[%c0_45, %c0_46] : memref<4x4xf32, #tpu.memory_space<vmem>>, vector<4x1xf32>
    %112 = vector.extract_strided_slice %110 {offsets = [0, 0], sizes = [1, 128], strides = [1, 1]} : vector<4x128xf32> to vector<1x128xf32>
    %113 = vector.broadcast %111 : vector<4x1xf32> to vector<4x128xf32>
    %114 = vector.broadcast %112 : vector<1x128xf32> to vector<4x128xf32>
    %115 = arith.mulf %113, %114 : vector<4x128xf32>
    %c0_47 = arith.constant 0 : index
    %c1_48 = arith.constant 1 : index
    %116 = vector.load %arg6[%c0_47, %c1_48] : memref<4x4xf32, #tpu.memory_space<vmem>>, vector<4x1xf32>
    %117 = vector.extract_strided_slice %110 {offsets = [1, 0], sizes = [1, 128], strides = [1, 1]} : vector<4x128xf32> to vector<1x128xf32>
    %118 = vector.broadcast %116 : vector<4x1xf32> to vector<4x128xf32>
    %119 = vector.broadcast %117 : vector<1x128xf32> to vector<4x128xf32>
    %120 = arith.mulf %118, %119 : vector<4x128xf32>
    %121 = arith.addf %115, %120 : vector<4x128xf32>
    %c0_49 = arith.constant 0 : index
    %c2_50 = arith.constant 2 : index
    %122 = vector.load %arg6[%c0_49, %c2_50] : memref<4x4xf32, #tpu.memory_space<vmem>>, vector<4x1xf32>
    %123 = vector.extract_strided_slice %110 {offsets = [2, 0], sizes = [1, 128], strides = [1, 1]} : vector<4x128xf32> to vector<1x128xf32>
    %124 = vector.broadcast %122 : vector<4x1xf32> to vector<4x128xf32>
    %125 = vector.broadcast %123 : vector<1x128xf32> to vector<4x128xf32>
    %126 = arith.mulf %124, %125 : vector<4x128xf32>
    %127 = arith.addf %121, %126 : vector<4x128xf32>
    %c0_51 = arith.constant 0 : index
    %c3_52 = arith.constant 3 : index
    %128 = vector.load %arg6[%c0_51, %c3_52] : memref<4x4xf32, #tpu.memory_space<vmem>>, vector<4x1xf32>
    %129 = vector.extract_strided_slice %110 {offsets = [3, 0], sizes = [1, 128], strides = [1, 1]} : vector<4x128xf32> to vector<1x128xf32>
    %130 = vector.broadcast %128 : vector<4x1xf32> to vector<4x128xf32>
    %131 = vector.broadcast %129 : vector<1x128xf32> to vector<4x128xf32>
    %132 = arith.mulf %130, %131 : vector<4x128xf32>
    %133 = arith.addf %127, %132 : vector<4x128xf32>
    %c0_53 = arith.constant 0 : index
    %c0_54 = arith.constant 0 : index
    %134 = vector.load %arg7[%c0_53, %c0_54] : memref<4x1xf32, #tpu.memory_space<vmem>>, vector<4x1xf32>
    %135 = vector.broadcast %134 : vector<4x1xf32> to vector<4x128xf32>
    %136 = arith.addf %133, %135 : vector<4x128xf32>
    %cst_55 = arith.constant 0.000000e+00 : f32
    %137 = vector.broadcast %cst_55 : f32 to vector<4x128xf32>
    %138 = arith.maximumf %136, %137 : vector<4x128xf32>
    %139 = arith.addf %37, %138 : vector<4x128xf32>
    %c0_56 = arith.constant 0 : index
    %c0_57 = arith.constant 0 : index
    %c0_58 = arith.constant 0 : index
    %140 = vector.load %arg9[%c0_56, %c0_57, %c0_58] : memref<1x4x128xf32, #tpu.memory_space<vmem>>, vector<1x4x128xf32>
    %141 = vector.shape_cast %140 : vector<1x4x128xf32> to vector<4x128xf32>
    %142 = vector.shape_cast %139 : vector<4x128xf32> to vector<1x4x128xf32>
    tpu.vector_store %arg9[%c0_56, %c0_57, %c0_58], %142 {strides = array<i32>} : memref<1x4x128xf32, #tpu.memory_space<vmem>>, vector<1x4x128xf32>,
    return
  }
  func.func @transform_0(%arg0: i32) -> (i32, i32, i32) {
    %c0_i32 = arith.constant 0 : i32
    %c0_i32_0 = arith.constant 0 : i32
    %c0_i32_1 = arith.constant 0 : i32
    return %arg0, %c0_i32, %c0_i32_0 : i32, i32, i32
  }
  func.func @transform_1(%arg0: i32) -> (i32, i32) {
    %c0_i32 = arith.constant 0 : i32
    %c0_i32_0 = arith.constant 0 : i32
    %c0_i32_1 = arith.constant 0 : i32
    return %c0_i32, %c0_i32_0 : i32, i32
  }
  func.func @transform_2(%arg0: i32) -> (i32, i32) {
    %c0_i32 = arith.constant 0 : i32
    %c0_i32_0 = arith.constant 0 : i32
    %c0_i32_1 = arith.constant 0 : i32
    return %c0_i32, %c0_i32_0 : i32, i32
  }
  func.func @transform_3(%arg0: i32) -> (i32, i32) {
    %c0_i32 = arith.constant 0 : i32
    %c0_i32_0 = arith.constant 0 : i32
    %c0_i32_1 = arith.constant 0 : i32
    return %c0_i32, %c0_i32_0 : i32, i32
  }
  func.func @transform_4(%arg0: i32) -> (i32, i32) {
    %c0_i32 = arith.constant 0 : i32
    %c0_i32_0 = arith.constant 0 : i32
    %c0_i32_1 = arith.constant 0 : i32
    return %c0_i32, %c0_i32_0 : i32, i32
  }
  func.func @transform_5(%arg0: i32) -> (i32, i32) {
    %c0_i32 = arith.constant 0 : i32
    %c0_i32_0 = arith.constant 0 : i32
    %c0_i32_1 = arith.constant 0 : i32
    return %c0_i32, %c0_i32_0 : i32, i32
  }
  func.func @transform_6(%arg0: i32) -> (i32, i32) {
    %c0_i32 = arith.constant 0 : i32
    %c0_i32_0 = arith.constant 0 : i32
    %c0_i32_1 = arith.constant 0 : i32
    return %c0_i32, %c0_i32_0 : i32, i32
  }
  func.func @transform_7(%arg0: i32) -> (i32, i32) {
    %c0_i32 = arith.constant 0 : i32
    %c0_i32_0 = arith.constant 0 : i32
    %c0_i32_1 = arith.constant 0 : i32
    return %c0_i32, %c0_i32_0 : i32, i32
  }
  func.func @transform_8(%arg0: i32) -> (i32, i32, i32) {
    %c0_i32 = arith.constant 0 : i32
    %c0_i32_0 = arith.constant 0 : i32
    %c0_i32_1 = arith.constant 0 : i32
    return %arg0, %c0_i32, %c0_i32_0 : i32, i32, i32
  }
}

</mosaic_0001>

<llo_original>
// kernel: tpu_custom_call.1
$region0: #{tpu_custom_call.1}
  #allocation0 [shape = 'u32[]', space=smem, size = 0x4, offset = 0x4, fixed_abs, tag = 'smem constant byte address 0x4 - core index']
  #allocation1 [shape = 'u32[144,128]{1,0:T(1,128)}', space=vmem, size = 0x12000, scoped, tag = 'internal scratch']
  %s0 = inlined_call_operand.hbm [shape: f32[1,4,512], index: 0, kind: input, shape index: {}]
  %s1 = inlined_call_operand.hbm [shape: f32[4,512], index: 1, kind: input, shape index: {}]
  %s2 = inlined_call_operand.vmem [shape: f32[9,128], index: 2, kind: input, shape index: {}]
  %s3 = inlined_call_operand.vmem [shape: f32[4,9], index: 3, kind: input, shape index: {}]
  %s4 = inlined_call_operand.vmem [shape: f32[4,1], index: 4, kind: input, shape index: {}]
  %s5 = inlined_call_operand.vmem [shape: f32[4,4], index: 5, kind: input, shape index: {}]
  %s6 = inlined_call_operand.vmem [shape: f32[4,1], index: 6, kind: input, shape index: {}]
  %s7 = inlined_call_operand.hbm [shape: f32[512,128], index: 7, kind: input, shape index: {}]
  %s8 = inlined_call_operand.hbm [shape: f32[1,4,128], index: 8, kind: output, shape index: {}]
  %s9 = sld [smem:[#allocation0]]
  $region54: #{tpu_custom_call.1} parent=0
    _
  %s11 = ssub.s32 1, %s9
  %s12 = scalar_select 0, %s11, %s9
  $region1: #{tpu_custom_call.1} parent=0
    #allocation2 [shape = 'u8[8192]{0}', space=vmem, size = 0x2000, scoped, tag = 'input window, operand 0, single buffered']
    #allocation3 [shape = 's32[1]{0}', space=sflag, size = 0x4, scoped, tag = 'scoped memory for tpu_custom_call.1']
    #allocation4 [shape = 's32[1]{0}', space=sflag, size = 0x4, scoped, tag = 'scoped memory for tpu_custom_call.1']
    #allocation5 [shape = 'u8[8192]{0}', space=vmem, size = 0x2000, scoped, tag = 'input window, operand 1, single buffered']
    #allocation6 [shape = 's32[1]{0}', space=sflag, size = 0x4, scoped, tag = 'scoped memory for tpu_custom_call.1']
    #allocation7 [shape = 'u8[262144]{0}', space=vmem, size = 0x40000, scoped, tag = 'input window, operand 7, single buffered']
    #allocation8 [shape = 'u8[2048]{0}', space=vmem, size = 0x800, scoped, tag = 'output window, operand 0, single buffered']
    %13 = vsyncpa [#allocation3], 0
    %14 = vsyncpa [#allocation6], 0
    %15 = vsyncpa [#allocation4], 0
    // Predicated region
    $region2: #{tpu_custom_call.1} parent=1 // pred_check
      _
    $region3: #{tpu_custom_call.1} parent=1 // pred_check_branch
      %17 = sbr.rel (0) target = $region5
    $region4: #{tpu_custom_call.1} parent=1 // pred_region
      %s19 = ssub.s32 256, 256
      %20 = vsyncadd [#allocation3], %s19
      %s22 = sshll.u32 [#allocation2], 4
      %s23 = int_to_ptr.vmem [resolvable:$true] %s22
      %25 = dma.hbm_to_vmem [thread:$0]  %s0, 256, %s23, [#allocation3]
    $region5: #{tpu_custom_call.1} parent=1 // pred_fallthru
      _
    // Predicated region
    $region6: #{tpu_custom_call.1} parent=1 // pred_check
      _
    $region7: #{tpu_custom_call.1} parent=1 // pred_check_branch
      %27 = sbr.rel (0) target = $region9
    $region8: #{tpu_custom_call.1} parent=1 // pred_region
      %s29 = ssub.s32 256, 256
      %30 = vsyncadd [#allocation6], %s29
      %s32 = sshll.u32 [#allocation5], 4
      %s33 = int_to_ptr.vmem [resolvable:$true] %s32
      %35 = dma.hbm_to_vmem [thread:$0]  %s1, 256, %s33, [#allocation6]
    $region9: #{tpu_custom_call.1} parent=1 // pred_fallthru
      _
    // Predicated region
    $region10: #{tpu_custom_call.1} parent=1 // pred_check
      _
    $region11: #{tpu_custom_call.1} parent=1 // pred_check_branch
      %37 = sbr.rel (0) target = $region13
    $region12: #{tpu_custom_call.1} parent=1 // pred_region
      _
    $region13: #{tpu_custom_call.1} parent=1 // pred_fallthru
      _
    // Predicated region
    $region14: #{tpu_custom_call.1} parent=1 // pred_check
      _
    $region15: #{tpu_custom_call.1} parent=1 // pred_check_branch
      %39 = sbr.rel (0) target = $region17
    $region16: #{tpu_custom_call.1} parent=1 // pred_region
      _
    $region17: #{tpu_custom_call.1} parent=1 // pred_fallthru
      _
    // Predicated region
    $region18: #{tpu_custom_call.1} parent=1 // pred_check
      _
    $region19: #{tpu_custom_call.1} parent=1 // pred_check_branch
      %41 = sbr.rel (0) target = $region21
    $region20: #{tpu_custom_call.1} parent=1 // pred_region
      _
    $region21: #{tpu_custom_call.1} parent=1 // pred_fallthru
      _
    // Predicated region
    $region22: #{tpu_custom_call.1} parent=1 // pred_check
      _
    $region23: #{tpu_custom_call.1} parent=1 // pred_check_branch
      %43 = sbr.rel (0) target = $region25
    $region24: #{tpu_custom_call.1} parent=1 // pred_region
      _
    $region25: #{tpu_custom_call.1} parent=1 // pred_fallthru
      _
    // Predicated region
    $region26: #{tpu_custom_call.1} parent=1 // pred_check
      _
    $region27: #{tpu_custom_call.1} parent=1 // pred_check_branch
      %45 = sbr.rel (0) target = $region29
    $region28: #{tpu_custom_call.1} parent=1 // pred_region
      _
    $region29: #{tpu_custom_call.1} parent=1 // pred_fallthru
      _
    // Predicated region
    $region30: #{tpu_custom_call.1} parent=1 // pred_check
      _
    $region31: #{tpu_custom_call.1} parent=1 // pred_check_branch
      %47 = sbr.rel (0) target = $region33
    $region32: #{tpu_custom_call.1} parent=1 // pred_region
      %s49 = ssub.s32 8192, 8192
      %50 = vsyncadd [#allocation6], %s49
      %s51 = sshll.u32 [#allocation7], 4
      %s52 = int_to_ptr.vmem [resolvable:$true] %s51
      %57 = dma.hbm_to_vmem [thread:$0]  %s7, 8192, %s52, [#allocation6], 128, 128, 8
    $region33: #{tpu_custom_call.1} parent=1 // pred_fallthru
      _
    // Predicated region
    $region34: #{tpu_custom_call.1} parent=1 // pred_check
      _
    $region35: #{tpu_custom_call.1} parent=1 // pred_check_branch
      %59 = sbr.rel (0) target = $region37
    $region36: #{tpu_custom_call.1} parent=1 // pred_region
      %60 = dma.done [#allocation3], 256
    $region37: #{tpu_custom_call.1} parent=1 // pred_fallthru
      _
    // Predicated region
    $region38: #{tpu_custom_call.1} parent=1 // pred_check
      _
    $region39: #{tpu_custom_call.1} parent=1 // pred_check_branch
      %62 = sbr.rel (0) target = $region41
    $region40: #{tpu_custom_call.1} parent=1 // pred_region
      %63 = dma.done [#allocation6], 256
    $region41: #{tpu_custom_call.1} parent=1 // pred_fallthru
      _
    // Predicated region
    $region42: #{tpu_custom_call.1} parent=1 // pred_check
      _
    $region43: #{tpu_custom_call.1} parent=1 // pred_check_branch
      %65 = sbr.rel (0) target = $region45
    $region44: #{tpu_custom_call.1} parent=1 // pred_region
      %66 = dma.done [#allocation6], 8192
    $region45: #{tpu_custom_call.1} parent=1 // pred_fallthru
      _
    %v67 = vld [vmem:[#allocation2] sm:$0xff]
    %v68 = vld [vmem:[#allocation2 + $0x8] sm:$0xff]
    %v69 = vmax.f32 %v67, 0.0
    %v70 = vmax.f32 %v68, 0.0
    %v71 = vld [vmem:[#allocation5] ss:$4 sm:$0xf]
    %s72 = scalar_lea.vmem [#allocation5], 1
    %v73 = vld [vmem:[%s72] ss:$4 sm:$0xf]
    %s74 = scalar_lea.vmem [#allocation5], 2
    %v75 = vld [vmem:[%s74] ss:$4 sm:$0xf]
    %s76 = scalar_lea.vmem [#allocation5], 3
    %v77 = vld [vmem:[%s76] ss:$4 sm:$0xf]
    %v80 = vcombine.high %v69, %v69
    %v81 = vcombine.high %v70, %v70
    %84 = vrot.lane.b32.xlu0 %v69, 1
    %v85 = vpop.permute.xlu0 %84
    %86 = vrot.lane.b32.xlu0 %v80, 1
    %v87 = vpop.permute.xlu0 %86
    %88 = vrot.lane.b32.xlu0 %v70, 1
    %v89 = vpop.permute.xlu0 %88
    %90 = vrot.lane.b32.xlu0 %v81, 1
    %v91 = vpop.permute.xlu0 %90
    %v92 = vlaneseq
    %v93 = vand.u32 %v92, 127
    %vm94 = vcmp.lt.s32.totalorder %v93, 1
    %v95 = vsel %vm94, %v89, %v91
    %v96 = vsel %vm94, %v87, %v89
    %v97 = vsel %vm94, %v85, %v87
    %v98 = vsel %vm94, %v91, %v85
    %v100 = vlaneseq
    %v101 = vshrl.u32 %v100, 7
    %v102 = vsub.s32 0, %v101
    %v103 = vrot.slane %v71, %v102
    %v104 = vlaneseq
    %v105 = vshrl.u32 %v104, 7
    %v106 = vsub.s32 1, %v105
    %v107 = vrot.slane %v71, %v106
    %v108 = vlaneseq
    %v109 = vshrl.u32 %v108, 7
    %v110 = vsub.s32 2, %v109
    %v111 = vrot.slane %v71, %v110
    %v112 = vlaneseq
    %v113 = vshrl.u32 %v112, 7
    %v114 = vsub.s32 3, %v113
    %v115 = vrot.slane %v71, %v114
    %v120 = vmul.f32 %v103, %v98
    %v121 = vmul.f32 %v107, %v97
    %v122 = vmul.f32 %v111, %v96
    %v123 = vmul.f32 %v115, %v95
    %124 = vrot.lane.b32.xlu0 %v69, 127
    %v125 = vpop.permute.xlu0 %124
    %126 = vrot.lane.b32.xlu0 %v80, 127
    %v127 = vpop.permute.xlu0 %126
    %128 = vrot.lane.b32.xlu0 %v70, 127
    %v129 = vpop.permute.xlu0 %128
    %130 = vrot.lane.b32.xlu0 %v81, 127
    %v131 = vpop.permute.xlu0 %130
    %vm132 = vcmp.lt.s32.totalorder %v93, 127
    %v133 = vsel %vm132, %v129, %v131
    %v134 = vsel %vm132, %v127, %v129
    %v135 = vsel %vm132, %v125, %v127
    %v136 = vsel %vm132, %v131, %v125
    %v138 = vlaneseq
    %v139 = vshrl.u32 %v138, 7
    %v140 = vsub.s32 0, %v139
    %v141 = vrot.slane %v73, %v140
    %v142 = vlaneseq
    %v143 = vshrl.u32 %v142, 7
    %v144 = vsub.s32 1, %v143
    %v145 = vrot.slane %v73, %v144
    %v146 = vlaneseq
    %v147 = vshrl.u32 %v146, 7
    %v148 = vsub.s32 2, %v147
    %v149 = vrot.slane %v73, %v148
    %v150 = vlaneseq
    %v151 = vshrl.u32 %v150, 7
    %v152 = vsub.s32 3, %v151
    %v153 = vrot.slane %v73, %v152
    %v158 = vmul.f32 %v141, %v135
    %v159 = vmul.f32 %v145, %v134
    %v160 = vmul.f32 %v149, %v133
    %v161 = vmul.f32 %v153, %v136
    %v162 = vmax.f32 %v120, %v158
    %v163 = vmax.f32 %v121, %v159
    %v164 = vmax.f32 %v122, %v160
    %v165 = vmax.f32 %v123, %v161
    %v166 = vmax.f32 %v162, %v69
    %v167 = vmax.f32 %v163, %v80
    %v168 = vmax.f32 %v164, %v70
    %v169 = vmax.f32 %v165, %v81
    %v170 = vadd.f32 %v120, %v158
    %v171 = vadd.f32 %v121, %v159
    %v172 = vadd.f32 %v122, %v160
    %v173 = vadd.f32 %v123, %v161
    %v174 = vadd.f32 %v170, %v69
    %v175 = vadd.f32 %v171, %v80
    %v176 = vadd.f32 %v172, %v70
    %v177 = vadd.f32 %v173, %v81
    %178 = vrot.lane.b32.xlu0 %v166, 16
    %v179 = vpop.permute.xlu0 %178
    %180 = vrot.lane.b32.xlu0 %v167, 16
    %v181 = vpop.permute.xlu0 %180
    %182 = vrot.lane.b32.xlu0 %v168, 16
    %v183 = vpop.permute.xlu0 %182
    %184 = vrot.lane.b32.xlu0 %v169, 16
    %v185 = vpop.permute.xlu0 %184
    %vm186 = vcmp.lt.s32.totalorder %v93, 16
    %v187 = vsel %vm186, %v183, %v185
    %v188 = vsel %vm186, %v181, %v183
    %v189 = vsel %vm186, %v179, %v181
    %v190 = vsel %vm186, %v185, %v179
    %v192 = vlaneseq
    %v193 = vshrl.u32 %v192, 7
    %v194 = vsub.s32 0, %v193
    %v195 = vrot.slane %v75, %v194
    %v196 = vlaneseq
    %v197 = vshrl.u32 %v196, 7
    %v198 = vsub.s32 1, %v197
    %v199 = vrot.slane %v75, %v198
    %v200 = vlaneseq
    %v201 = vshrl.u32 %v200, 7
    %v202 = vsub.s32 2, %v201
    %v203 = vrot.slane %v75, %v202
    %v204 = vlaneseq
    %v205 = vshrl.u32 %v204, 7
    %v206 = vsub.s32 3, %v205
    %v207 = vrot.slane %v75, %v206
    %v212 = vmul.f32 %v195, %v190
    %v213 = vmul.f32 %v199, %v189
    %v214 = vmul.f32 %v203, %v188
    %v215 = vmul.f32 %v207, %v187
    %216 = vrot.lane.b32.xlu0 %v166, 112
    %v217 = vpop.permute.xlu0 %216
    %218 = vrot.lane.b32.xlu0 %v167, 112
    %v219 = vpop.permute.xlu0 %218
    %220 = vrot.lane.b32.xlu0 %v168, 112
    %v221 = vpop.permute.xlu0 %220
    %222 = vrot.lane.b32.xlu0 %v169, 112
    %v223 = vpop.permute.xlu0 %222
    %vm224 = vcmp.lt.s32.totalorder %v93, 112
    %v225 = vsel %vm224, %v221, %v223
    %v226 = vsel %vm224, %v219, %v221
    %v227 = vsel %vm224, %v217, %v219
    %v228 = vsel %vm224, %v223, %v217
    %v230 = vlaneseq
    %v231 = vshrl.u32 %v230, 7
    %v232 = vsub.s32 0, %v231
    %v233 = vrot.slane %v77, %v232
    %v234 = vlaneseq
    %v235 = vshrl.u32 %v234, 7
    %v236 = vsub.s32 1, %v235
    %v237 = vrot.slane %v77, %v236
    %v238 = vlaneseq
    %v239 = vshrl.u32 %v238, 7
    %v240 = vsub.s32 2, %v239
    %v241 = vrot.slane %v77, %v240
    %v242 = vlaneseq
    %v243 = vshrl.u32 %v242, 7
    %v244 = vsub.s32 3, %v243
    %v245 = vrot.slane %v77, %v244
    %v250 = vmul.f32 %v233, %v227
    %v251 = vmul.f32 %v237, %v226
    %v252 = vmul.f32 %v241, %v225
    %v253 = vmul.f32 %v245, %v228
    %v254 = vmax.f32 %v212, %v250
    %v255 = vmax.f32 %v213, %v251
    %v256 = vmax.f32 %v214, %v252
    %v257 = vmax.f32 %v215, %v253
    %v258 = vmax.f32 %v254, %v166
    %v259 = vmax.f32 %v255, %v167
    %v260 = vmax.f32 %v256, %v168
    %v261 = vmax.f32 %v257, %v169
    %262 = vrot.lane.b32.xlu0 %v174, 16
    %v263 = vpop.permute.xlu0 %262
    %264 = vrot.lane.b32.xlu0 %v175, 16
    %v265 = vpop.permute.xlu0 %264
    %266 = vrot.lane.b32.xlu0 %v176, 16
    %v267 = vpop.permute.xlu0 %266
    %268 = vrot.lane.b32.xlu0 %v177, 16
    %v269 = vpop.permute.xlu0 %268
    %v270 = vsel %vm186, %v267, %v269
    %v271 = vsel %vm186, %v265, %v267
    %v272 = vsel %vm186, %v263, %v265
    %v273 = vsel %vm186, %v269, %v263
    %v274 = vmul.f32 %v195, %v273
    %v275 = vmul.f32 %v199, %v272
    %v276 = vmul.f32 %v203, %v271
    %v277 = vmul.f32 %v207, %v270
    %278 = vrot.lane.b32.xlu0 %v174, 112
    %v279 = vpop.permute.xlu0 %278
    %280 = vrot.lane.b32.xlu0 %v175, 112
    %v281 = vpop.permute.xlu0 %280
    %282 = vrot.lane.b32.xlu0 %v176, 112
    %v283 = vpop.permute.xlu0 %282
    %284 = vrot.lane.b32.xlu0 %v177, 112
    %v285 = vpop.permute.xlu0 %284
    %v286 = vsel %vm224, %v283, %v285
    %v287 = vsel %vm224, %v281, %v283
    %v288 = vsel %vm224, %v279, %v281
    %v289 = vsel %vm224, %v285, %v279
    %v290 = vmul.f32 %v233, %v288
    %v291 = vmul.f32 %v237, %v287
    %v292 = vmul.f32 %v241, %v286
    %v293 = vmul.f32 %v245, %v289
    %v294 = vadd.f32 %v274, %v290
    %v295 = vadd.f32 %v275, %v291
    %v296 = vadd.f32 %v276, %v292
    %v297 = vadd.f32 %v277, %v293
    %v298 = vadd.f32 %v294, %v174
    %v299 = vadd.f32 %v295, %v175
    %v300 = vadd.f32 %v296, %v176
    %v301 = vadd.f32 %v297, %v177
    %v306 = vrot.slane %v298, 4
    %v307 = vrot.slane %v299, 4
    %v308 = vrot.slane %v300, 4
    %v309 = vrot.slane %v301, 4
    %vm314 = vcmask 1043456
    %v315 = vsel %vm314, %v258, %v306
    %v316 = vsel %vm314, %v259, %v307
    %v317 = vsel %vm314, %v260, %v308
    %v318 = vsel %vm314, %v261, %v309
    %v319 = vld [vmem:[#allocation7] sm:$0xff]
    %v320 = vld [vmem:[#allocation7 + $0x8] sm:$0xff]
    %v321 = vld [vmem:[#allocation7 + $0x10] sm:$0xff]
    %v322 = vld [vmem:[#allocation7 + $0x18] sm:$0xff]
    %v323 = vld [vmem:[#allocation7 + $0x20] sm:$0xff]
    %v324 = vld [vmem:[#allocation7 + $0x28] sm:$0xff]
    %v325 = vld [vmem:[#allocation7 + $0x30] sm:$0xff]
    %v326 = vld [vmem:[#allocation7 + $0x38] sm:$0xff]
    %v327 = vld [vmem:[#allocation7 + $0x40] sm:$0xff]
    %v328 = vld [vmem:[#allocation7 + $0x48] sm:$0xff]
    %v329 = vld [vmem:[#allocation7 + $0x50] sm:$0xff]
    %v330 = vld [vmem:[#allocation7 + $0x58] sm:$0xff]
    %v331 = vld [vmem:[#allocation7 + $0x60] sm:$0xff]
    %v332 = vld [vmem:[#allocation7 + $0x68] sm:$0xff]
    %v333 = vld [vmem:[#allocation7 + $0x70] sm:$0xff]
    %v334 = vld [vmem:[#allocation7 + $0x78] sm:$0xff]
    %v335 = vld [vmem:[#allocation7 + $0x80] sm:$0xff]
    %v336 = vld [vmem:[#allocation7 + $0x88] sm:$0xff]
    %v337 = vld [vmem:[#allocation7 + $0x90] sm:$0xff]
    %v338 = vld [vmem:[#allocation7 + $0x98] sm:$0xff]
    %v339 = vld [vmem:[#allocation7 + $0xa0] sm:$0xff]
    %v340 = vld [vmem:[#allocation7 + $0xa8] sm:$0xff]
    %v341 = vld [vmem:[#allocation7 + $0xb0] sm:$0xff]
    %v342 = vld [vmem:[#allocation7 + $0xb8] sm:$0xff]
    %v343 = vld [vmem:[#allocation7 + $0xc0] sm:$0xff]
    %v344 = vld [vmem:[#allocation7 + $0xc8] sm:$0xff]
    %v345 = vld [vmem:[#allocation7 + $0xd0] sm:$0xff]
    %v346 = vld [vmem:[#allocation7 + $0xd8] sm:$0xff]
    %v347 = vld [vmem:[#allocation7 + $0xe0] sm:$0xff]
    %v348 = vld [vmem:[#allocation7 + $0xe8] sm:$0xff]
    %v349 = vld [vmem:[#allocation7 + $0xf0] sm:$0xff]
    %v350 = vld [vmem:[#allocation7 + $0xf8] sm:$0xff]
    %v351 = vld [vmem:[#allocation7 + $0x100] sm:$0xff]
    %v352 = vld [vmem:[#allocation7 + $0x108] sm:$0xff]
    %v353 = vld [vmem:[#allocation7 + $0x110] sm:$0xff]
    %v354 = vld [vmem:[#allocation7 + $0x118] sm:$0xff]
    %v355 = vld [vmem:[#allocation7 + $0x120] sm:$0xff]
    %v356 = vld [vmem:[#allocation7 + $0x128] sm:$0xff]
    %v357 = vld [vmem:[#allocation7 + $0x130] sm:$0xff]
    %v358 = vld [vmem:[#allocation7 + $0x138] sm:$0xff]
    %v359 = vld [vmem:[#allocation7 + $0x140] sm:$0xff]
    %v360 = vld [vmem:[#allocation7 + $0x148] sm:$0xff]
    %v361 = vld [vmem:[#allocation7 + $0x150] sm:$0xff]
    %v362 = vld [vmem:[#allocation7 + $0x158] sm:$0xff]
    %v363 = vld [vmem:[#allocation7 + $0x160] sm:$0xff]
    %v364 = vld [vmem:[#allocation7 + $0x168] sm:$0xff]
    %v365 = vld [vmem:[#allocation7 + $0x170] sm:$0xff]
    %v366 = vld [vmem:[#allocation7 + $0x178] sm:$0xff]
    %v367 = vld [vmem:[#allocation7 + $0x180] sm:$0xff]
    %v368 = vld [vmem:[#allocation7 + $0x188] sm:$0xff]
    %v369 = vld [vmem:[#allocation7 + $0x190] sm:$0xff]
    %v370 = vld [vmem:[#allocation7 + $0x198] sm:$0xff]
    %v371 = vld [vmem:[#allocation7 + $0x1a0] sm:$0xff]
    %v372 = vld [vmem:[#allocation7 + $0x1a8] sm:$0xff]
    %v373 = vld [vmem:[#allocation7 + $0x1b0] sm:$0xff]
    %v374 = vld [vmem:[#allocation7 + $0x1b8] sm:$0xff]
    %v375 = vld [vmem:[#allocation7 + $0x1c0] sm:$0xff]
    %v376 = vld [vmem:[#allocation7 + $0x1c8] sm:$0xff]
    %v377 = vld [vmem:[#allocation7 + $0x1d0] sm:$0xff]
    %v378 = vld [vmem:[#allocation7 + $0x1d8] sm:$0xff]
    %v379 = vld [vmem:[#allocation7 + $0x1e0] sm:$0xff]
    %v380 = vld [vmem:[#allocation7 + $0x1e8] sm:$0xff]
    %v381 = vld [vmem:[#allocation7 + $0x1f0] sm:$0xff]
    %v382 = vld [vmem:[#allocation7 + $0x1f8] sm:$0xff]
    %383 = vmatprep.subr.mxu0 0.0
    %v384 = vand.u32 %v319, 4294901760
    %385 = vmatpush1.msra.mxu0 %v384
    %386 = vmatprep.subr.mxu0 0.0
    %v387 = vand.u32 %v320, 4294901760
    %388 = vmatpush1.msra.mxu0 %v387
    %389 = vmatprep.subr.mxu0 0.0
    %v390 = vand.u32 %v321, 4294901760
    %391 = vmatpush1.msra.mxu0 %v390
    %392 = vmatprep.subr.mxu0 0.0
    %v393 = vand.u32 %v322, 4294901760
    %394 = vmatpush1.msra.mxu0 %v393
    %395 = vmatprep.subr.mxu0 0.0
    %v396 = vand.u32 %v323, 4294901760
    %397 = vmatpush1.msra.mxu0 %v396
    %398 = vmatprep.subr.mxu0 0.0
    %v399 = vand.u32 %v324, 4294901760
    %400 = vmatpush1.msra.mxu0 %v399
    %401 = vmatprep.subr.mxu0 0.0
    %v402 = vand.u32 %v325, 4294901760
    %403 = vmatpush1.msra.mxu0 %v402
    %404 = vmatprep.subr.mxu0 0.0
    %v405 = vand.u32 %v326, 4294901760
    %406 = vmatpush1.msra.mxu0 %v405
    %407 = vmatprep.subr.mxu0 0.0
    %v408 = vand.u32 %v327, 4294901760
    %409 = vmatpush1.msra.mxu0 %v408
    %410 = vmatprep.subr.mxu0 0.0
    %v411 = vand.u32 %v328, 4294901760
    %412 = vmatpush1.msra.mxu0 %v411
    %413 = vmatprep.subr.mxu0 0.0
    %v414 = vand.u32 %v329, 4294901760
    %415 = vmatpush1.msra.mxu0 %v414
    %416 = vmatprep.subr.mxu0 0.0
    %v417 = vand.u32 %v330, 4294901760
    %418 = vmatpush1.msra.mxu0 %v417
    %419 = vmatprep.subr.mxu0 0.0
    %v420 = vand.u32 %v331, 4294901760
    %421 = vmatpush1.msra.mxu0 %v420
    %422 = vmatprep.subr.mxu0 0.0
    %v423 = vand.u32 %v332, 4294901760
    %424 = vmatpush1.msra.mxu0 %v423
    %425 = vmatprep.subr.mxu0 0.0
    %v426 = vand.u32 %v333, 4294901760
    %427 = vmatpush1.msra.mxu0 %v426
    %428 = vmatprep.subr.mxu0 0.0
    %v429 = vand.u32 %v334, 4294901760
    %430 = vmatpush1.msra.mxu0 %v429
    %431 = vmatprep.subr.mxu0 0.0
    %v432 = vand.u32 %v335, 4294901760
    %433 = vmatpush1.msra.mxu0 %v432
    %434 = vmatprep.subr.mxu0 0.0
    %v435 = vand.u32 %v336, 4294901760
    %436 = vmatpush1.msra.mxu0 %v435
    %437 = vmatprep.subr.mxu0 0.0
    %v438 = vand.u32 %v337, 4294901760
    %439 = vmatpush1.msra.mxu0 %v438
    %440 = vmatprep.subr.mxu0 0.0
    %v441 = vand.u32 %v338, 4294901760
    %442 = vmatpush1.msra.mxu0 %v441
    %443 = vmatprep.subr.mxu0 0.0
    %v444 = vand.u32 %v339, 4294901760
    %445 = vmatpush1.msra.mxu0 %v444
    %446 = vmatprep.subr.mxu0 0.0
    %v447 = vand.u32 %v340, 4294901760
    %448 = vmatpush1.msra.mxu0 %v447
    %449 = vmatprep.subr.mxu0 0.0
    %v450 = vand.u32 %v341, 4294901760
    %451 = vmatpush1.msra.mxu0 %v450
    %452 = vmatprep.subr.mxu0 0.0
    %v453 = vand.u32 %v342, 4294901760
    %454 = vmatpush1.msra.mxu0 %v453
    %455 = vmatprep.subr.mxu0 0.0
    %v456 = vand.u32 %v343, 4294901760
    %457 = vmatpush1.msra.mxu0 %v456
    %458 = vmatprep.subr.mxu0 0.0
    %v459 = vand.u32 %v344, 4294901760
    %460 = vmatpush1.msra.mxu0 %v459
    %461 = vmatprep.subr.mxu0 0.0
    %v462 = vand.u32 %v345, 4294901760
    %463 = vmatpush1.msra.mxu0 %v462
    %464 = vmatprep.subr.mxu0 0.0
    %v465 = vand.u32 %v346, 4294901760
    %466 = vmatpush1.msra.mxu0 %v465
    %467 = vmatprep.subr.mxu0 0.0
    %v468 = vand.u32 %v347, 4294901760
    %469 = vmatpush1.msra.mxu0 %v468
    %470 = vmatprep.subr.mxu0 0.0
    %v471 = vand.u32 %v348, 4294901760
    %472 = vmatpush1.msra.mxu0 %v471
    %473 = vmatprep.subr.mxu0 0.0
    %v474 = vand.u32 %v349, 4294901760
    %475 = vmatpush1.msra.mxu0 %v474
    %476 = vmatprep.subr.mxu0 0.0
    %v477 = vand.u32 %v350, 4294901760
    %478 = vmatpush1.msra.mxu0 %v477
    %v479 = vand.u32 %v316, 4294901760
    %v480 = vsub.f32 %v316, %v479
    %v481 = vand.u32 %v480, 4294901760
    %v482 = vsub.f32 %v480, %v481
    %v483 = vand.u32 %v482, 4294901760
    %484 = vmatprep.mubr.f32.mxu0 %v483
    %v485 = vand.u32 %v315, 4294901760
    %v486 = vsub.f32 %v315, %v485
    %v487 = vand.u32 %v486, 4294901760
    %v488 = vsub.f32 %v486, %v487
    %v489 = vand.u32 %v488, 4294901760
    %490 = vmatmul.mubr.f32.gmra.mrb[0].mxu0 %v489
    %v491 = vpop.f32.mrb[0].mxu0
    %v492 = vadd.f32 0.0, %v491
    %v493 = vpop.f32.mrb[0].mxu0
    %494 = vdwg.mxu0
    %495 = vmatprep.subr.mxu0 0.0
    %v496 = vand.u32 %v319, 4294901760
    %v497 = vsub.f32 %v319, %v496
    %v498 = vand.u32 %v497, 4294901760
    %v499 = vsub.f32 %v497, %v498
    %v500 = vand.u32 %v499, 4294901760
    %501 = vmatpush1.msra.mxu0 %v500
    %502 = vmatprep.subr.mxu0 0.0
    %v503 = vand.u32 %v320, 4294901760
    %v504 = vsub.f32 %v320, %v503
    %v505 = vand.u32 %v504, 4294901760
    %v506 = vsub.f32 %v504, %v505
    %v507 = vand.u32 %v506, 4294901760
    %508 = vmatpush1.msra.mxu0 %v507
    %509 = vmatprep.subr.mxu0 0.0
    %v510 = vand.u32 %v321, 4294901760
    %v511 = vsub.f32 %v321, %v510
    %v512 = vand.u32 %v511, 4294901760
    %v513 = vsub.f32 %v511, %v512
    %v514 = vand.u32 %v513, 4294901760
    %515 = vmatpush1.msra.mxu0 %v514
    %516 = vmatprep.subr.mxu0 0.0
    %v517 = vand.u32 %v322, 4294901760
    %v518 = vsub.f32 %v322, %v517
    %v519 = vand.u32 %v518, 4294901760
    %v520 = vsub.f32 %v518, %v519
    %v521 = vand.u32 %v520, 4294901760
    %522 = vmatpush1.msra.mxu0 %v521
    %523 = vmatprep.subr.mxu0 0.0
    %v524 = vand.u32 %v323, 4294901760
    %v525 = vsub.f32 %v323, %v524
    %v526 = vand.u32 %v525, 4294901760
    %v527 = vsub.f32 %v525, %v526
    %v528 = vand.u32 %v527, 4294901760
    %529 = vmatpush1.msra.mxu0 %v528
    %530 = vmatprep.subr.mxu0 0.0
    %v531 = vand.u32 %v324, 4294901760
    %v532 = vsub.f32 %v324, %v531
    %v533 = vand.u32 %v532, 4294901760
    %v534 = vsub.f32 %v532, %v533
    %v535 = vand.u32 %v534, 4294901760
    %536 = vmatpush1.msra.mxu0 %v535
    %537 = vmatprep.subr.mxu0 0.0
    %v538 = vand.u32 %v325, 4294901760
    %v539 = vsub.f32 %v325, %v538
    %v540 = vand.u32 %v539, 4294901760
    %v541 = vsub.f32 %v539, %v540
    %v542 = vand.u32 %v541, 4294901760
    %543 = vmatpush1.msra.mxu0 %v542
    %544 = vmatprep.subr.mxu0 0.0
    %v545 = vand.u32 %v326, 4294901760
    %v546 = vsub.f32 %v326, %v545
    %v547 = vand.u32 %v546, 4294901760
    %v548 = vsub.f32 %v546, %v547
    %v549 = vand.u32 %v548, 4294901760
    %550 = vmatpush1.msra.mxu0 %v549
    %551 = vmatprep.subr.mxu0 0.0
    %v552 = vand.u32 %v327, 4294901760
    %v553 = vsub.f32 %v327, %v552
    %v554 = vand.u32 %v553, 4294901760
    %v555 = vsub.f32 %v553, %v554
    %v556 = vand.u32 %v555, 4294901760
    %557 = vmatpush1.msra.mxu0 %v556
    %558 = vmatprep.subr.mxu0 0.0
    %v559 = vand.u32 %v328, 4294901760
    %v560 = vsub.f32 %v328, %v559
    %v561 = vand.u32 %v560, 4294901760
    %v562 = vsub.f32 %v560, %v561
    %v563 = vand.u32 %v562, 4294901760
    %564 = vmatpush1.msra.mxu0 %v563
    %565 = vmatprep.subr.mxu0 0.0
    %v566 = vand.u32 %v329, 4294901760
    %v567 = vsub.f32 %v329, %v566
    %v568 = vand.u32 %v567, 4294901760
    %v569 = vsub.f32 %v567, %v568
    %v570 = vand.u32 %v569, 4294901760
    %571 = vmatpush1.msra.mxu0 %v570
    %572 = vmatprep.subr.mxu0 0.0
    %v573 = vand.u32 %v330, 4294901760
    %v574 = vsub.f32 %v330, %v573
    %v575 = vand.u32 %v574, 4294901760
    %v576 = vsub.f32 %v574, %v575
    %v577 = vand.u32 %v576, 4294901760
    %578 = vmatpush1.msra.mxu0 %v577
    %579 = vmatprep.subr.mxu0 0.0
    %v580 = vand.u32 %v331, 4294901760
    %v581 = vsub.f32 %v331, %v580
    %v582 = vand.u32 %v581, 4294901760
    %v583 = vsub.f32 %v581, %v582
    %v584 = vand.u32 %v583, 4294901760
    %585 = vmatpush1.msra.mxu0 %v584
    %586 = vmatprep.subr.mxu0 0.0
    %v587 = vand.u32 %v332, 4294901760
    %v588 = vsub.f32 %v332, %v587
    %v589 = vand.u32 %v588, 4294901760
    %v590 = vsub.f32 %v588, %v589
    %v591 = vand.u32 %v590, 4294901760
    %592 = vmatpush1.msra.mxu0 %v591
    %593 = vmatprep.subr.mxu0 0.0
    %v594 = vand.u32 %v333, 4294901760
    %v595 = vsub.f32 %v333, %v594
    %v596 = vand.u32 %v595, 4294901760
    %v597 = vsub.f32 %v595, %v596
    %v598 = vand.u32 %v597, 4294901760
    %599 = vmatpush1.msra.mxu0 %v598
    %600 = vmatprep.subr.mxu0 0.0
    %v601 = vand.u32 %v334, 4294901760
    %v602 = vsub.f32 %v334, %v601
    %v603 = vand.u32 %v602, 4294901760
    %v604 = vsub.f32 %v602, %v603
    %v605 = vand.u32 %v604, 4294901760
    %606 = vmatpush1.msra.mxu0 %v605
    %607 = vmatprep.subr.mxu0 0.0
    %v608 = vand.u32 %v335, 4294901760
    %v609 = vsub.f32 %v335, %v608
    %v610 = vand.u32 %v609, 4294901760
    %v611 = vsub.f32 %v609, %v610
    %v612 = vand.u32 %v611, 4294901760
    %613 = vmatpush1.msra.mxu0 %v612
    %614 = vmatprep.subr.mxu0 0.0
    %v615 = vand.u32 %v336, 4294901760
    %v616 = vsub.f32 %v336, %v615
    %v617 = vand.u32 %v616, 4294901760
    %v618 = vsub.f32 %v616, %v617
    %v619 = vand.u32 %v618, 4294901760
    %620 = vmatpush1.msra.mxu0 %v619
    %621 = vmatprep.subr.mxu0 0.0
    %v622 = vand.u32 %v337, 4294901760
    %v623 = vsub.f32 %v337, %v622
    %v624 = vand.u32 %v623, 4294901760
    %v625 = vsub.f32 %v623, %v624
    %v626 = vand.u32 %v625, 4294901760
    %627 = vmatpush1.msra.mxu0 %v626
    %628 = vmatprep.subr.mxu0 0.0
    %v629 = vand.u32 %v338, 4294901760
    %v630 = vsub.f32 %v338, %v629
    %v631 = vand.u32 %v630, 4294901760
    %v632 = vsub.f32 %v630, %v631
    %v633 = vand.u32 %v632, 4294901760
    %634 = vmatpush1.msra.mxu0 %v633
    %635 = vmatprep.subr.mxu0 0.0
    %v636 = vand.u32 %v339, 4294901760
    %v637 = vsub.f32 %v339, %v636
    %v638 = vand.u32 %v637, 4294901760
    %v639 = vsub.f32 %v637, %v638
    %v640 = vand.u32 %v639, 4294901760
    %641 = vmatpush1.msra.mxu0 %v640
    %642 = vmatprep.subr.mxu0 0.0
    %v643 = vand.u32 %v340, 4294901760
    %v644 = vsub.f32 %v340, %v643
    %v645 = vand.u32 %v644, 4294901760
    %v646 = vsub.f32 %v644, %v645
    %v647 = vand.u32 %v646, 4294901760
    %648 = vmatpush1.msra.mxu0 %v647
    %649 = vmatprep.subr.mxu0 0.0
    %v650 = vand.u32 %v341, 4294901760
    %v651 = vsub.f32 %v341, %v650
    %v652 = vand.u32 %v651, 4294901760
    %v653 = vsub.f32 %v651, %v652
    %v654 = vand.u32 %v653, 4294901760
    %655 = vmatpush1.msra.mxu0 %v654
    %656 = vmatprep.subr.mxu0 0.0
    %v657 = vand.u32 %v342, 4294901760
    %v658 = vsub.f32 %v342, %v657
    %v659 = vand.u32 %v658, 4294901760
    %v660 = vsub.f32 %v658, %v659
    %v661 = vand.u32 %v660, 4294901760
    %662 = vmatpush1.msra.mxu0 %v661
    %663 = vmatprep.subr.mxu0 0.0
    %v664 = vand.u32 %v343, 4294901760
    %v665 = vsub.f32 %v343, %v664
    %v666 = vand.u32 %v665, 4294901760
    %v667 = vsub.f32 %v665, %v666
    %v668 = vand.u32 %v667, 4294901760
    %669 = vmatpush1.msra.mxu0 %v668
    %670 = vmatprep.subr.mxu0 0.0
    %v671 = vand.u32 %v344, 4294901760
    %v672 = vsub.f32 %v344, %v671
    %v673 = vand.u32 %v672, 4294901760
    %v674 = vsub.f32 %v672, %v673
    %v675 = vand.u32 %v674, 4294901760
    %676 = vmatpush1.msra.mxu0 %v675
    %677 = vmatprep.subr.mxu0 0.0
    %v678 = vand.u32 %v345, 4294901760
    %v679 = vsub.f32 %v345, %v678
    %v680 = vand.u32 %v679, 4294901760
    %v681 = vsub.f32 %v679, %v680
    %v682 = vand.u32 %v681, 4294901760
    %683 = vmatpush1.msra.mxu0 %v682
    %684 = vmatprep.subr.mxu0 0.0
    %v685 = vand.u32 %v346, 4294901760
    %v686 = vsub.f32 %v346, %v685
    %v687 = vand.u32 %v686, 4294901760
    %v688 = vsub.f32 %v686, %v687
    %v689 = vand.u32 %v688, 4294901760
    %690 = vmatpush1.msra.mxu0 %v689
    %691 = vmatprep.subr.mxu0 0.0
    %v692 = vand.u32 %v347, 4294901760
    %v693 = vsub.f32 %v347, %v692
    %v694 = vand.u32 %v693, 4294901760
    %v695 = vsub.f32 %v693, %v694
    %v696 = vand.u32 %v695, 4294901760
    %697 = vmatpush1.msra.mxu0 %v696
    %698 = vmatprep.subr.mxu0 0.0
    %v699 = vand.u32 %v348, 4294901760
    %v700 = vsub.f32 %v348, %v699
    %v701 = vand.u32 %v700, 4294901760
    %v702 = vsub.f32 %v700, %v701
    %v703 = vand.u32 %v702, 4294901760
    %704 = vmatpush1.msra.mxu0 %v703
    %705 = vmatprep.subr.mxu0 0.0
    %v706 = vand.u32 %v349, 4294901760
    %v707 = vsub.f32 %v349, %v706
    %v708 = vand.u32 %v707, 4294901760
    %v709 = vsub.f32 %v707, %v708
    %v710 = vand.u32 %v709, 4294901760
    %711 = vmatpush1.msra.mxu0 %v710
    %712 = vmatprep.subr.mxu0 0.0
    %v713 = vand.u32 %v350, 4294901760
    %v714 = vsub.f32 %v350, %v713
    %v715 = vand.u32 %v714, 4294901760
    %v716 = vsub.f32 %v714, %v715
    %v717 = vand.u32 %v716, 4294901760
    %718 = vmatpush1.msra.mxu0 %v717
    %v719 = vand.u32 %v316, 4294901760
    %720 = vmatprep.mubr.f32.mxu0 %v719
    %v721 = vand.u32 %v315, 4294901760
    %722 = vmatmul.mubr.f32.gmra.mrb[0].mxu0 %v721
    %v723 = vpop.f32.mrb[0].mxu0
    %v724 = vadd.f32 %v492, %v723
    %v725 = vpop.f32.mrb[0].mxu0
    %726 = vdwg.mxu0
    %727 = vmatprep.subr.mxu0 0.0
    %v728 = vand.u32 %v319, 4294901760
    %v729 = vsub.f32 %v319, %v728
    %730 = vmatpush1.msra.mxu0 %v729
    %731 = vmatprep.subr.mxu0 0.0
    %v732 = vand.u32 %v320, 4294901760
    %v733 = vsub.f32 %v320, %v732
    %734 = vmatpush1.msra.mxu0 %v733
    %735 = vmatprep.subr.mxu0 0.0
    %v736 = vand.u32 %v321, 4294901760
    %v737 = vsub.f32 %v321, %v736
    %738 = vmatpush1.msra.mxu0 %v737
    %739 = vmatprep.subr.mxu0 0.0
    %v740 = vand.u32 %v322, 4294901760
    %v741 = vsub.f32 %v322, %v740
    %742 = vmatpush1.msra.mxu0 %v741
    %743 = vmatprep.subr.mxu0 0.0
    %v744 = vand.u32 %v323, 4294901760
    %v745 = vsub.f32 %v323, %v744
    %746 = vmatpush1.msra.mxu0 %v745
    %747 = vmatprep.subr.mxu0 0.0
    %v748 = vand.u32 %v324, 4294901760
    %v749 = vsub.f32 %v324, %v748
    %750 = vmatpush1.msra.mxu0 %v749
    %751 = vmatprep.subr.mxu0 0.0
    %v752 = vand.u32 %v325, 4294901760
    %v753 = vsub.f32 %v325, %v752
    %754 = vmatpush1.msra.mxu0 %v753
    %755 = vmatprep.subr.mxu0 0.0
    %v756 = vand.u32 %v326, 4294901760
    %v757 = vsub.f32 %v326, %v756
    %758 = vmatpush1.msra.mxu0 %v757
    %759 = vmatprep.subr.mxu0 0.0
    %v760 = vand.u32 %v327, 4294901760
    %v761 = vsub.f32 %v327, %v760
    %762 = vmatpush1.msra.mxu0 %v761
    %763 = vmatprep.subr.mxu0 0.0
    %v764 = vand.u32 %v328, 4294901760
    %v765 = vsub.f32 %v328, %v764
    %766 = vmatpush1.msra.mxu0 %v765
    %767 = vmatprep.subr.mxu0 0.0
    %v768 = vand.u32 %v329, 4294901760
    %v769 = vsub.f32 %v329, %v768
    %770 = vmatpush1.msra.mxu0 %v769
    %771 = vmatprep.subr.mxu0 0.0
    %v772 = vand.u32 %v330, 4294901760
    %v773 = vsub.f32 %v330, %v772
    %774 = vmatpush1.msra.mxu0 %v773
    %775 = vmatprep.subr.mxu0 0.0
    %v776 = vand.u32 %v331, 4294901760
    %v777 = vsub.f32 %v331, %v776
    %778 = vmatpush1.msra.mxu0 %v777
    %779 = vmatprep.subr.mxu0 0.0
    %v780 = vand.u32 %v332, 4294901760
    %v781 = vsub.f32 %v332, %v780
    %782 = vmatpush1.msra.mxu0 %v781
    %783 = vmatprep.subr.mxu0 0.0
    %v784 = vand.u32 %v333, 4294901760
    %v785 = vsub.f32 %v333, %v784
    %786 = vmatpush1.msra.mxu0 %v785
    %787 = vmatprep.subr.mxu0 0.0
    %v788 = vand.u32 %v334, 4294901760
    %v789 = vsub.f32 %v334, %v788
    %790 = vmatpush1.msra.mxu0 %v789
    %791 = vmatprep.subr.mxu0 0.0
    %v792 = vand.u32 %v335, 4294901760
    %v793 = vsub.f32 %v335, %v792
    %794 = vmatpush1.msra.mxu0 %v793
    %795 = vmatprep.subr.mxu0 0.0
    %v796 = vand.u32 %v336, 4294901760
    %v797 = vsub.f32 %v336, %v796
    %798 = vmatpush1.msra.mxu0 %v797
    %799 = vmatprep.subr.mxu0 0.0
    %v800 = vand.u32 %v337, 4294901760
    %v801 = vsub.f32 %v337, %v800
    %802 = vmatpush1.msra.mxu0 %v801
    %803 = vmatprep.subr.mxu0 0.0
    %v804 = vand.u32 %v338, 4294901760
    %v805 = vsub.f32 %v338, %v804
    %806 = vmatpush1.msra.mxu0 %v805
    %807 = vmatprep.subr.mxu0 0.0
    %v808 = vand.u32 %v339, 4294901760
    %v809 = vsub.f32 %v339, %v808
    %810 = vmatpush1.msra.mxu0 %v809
    %811 = vmatprep.subr.mxu0 0.0
    %v812 = vand.u32 %v340, 4294901760
    %v813 = vsub.f32 %v340, %v812
    %814 = vmatpush1.msra.mxu0 %v813
    %815 = vmatprep.subr.mxu0 0.0
    %v816 = vand.u32 %v341, 4294901760
    %v817 = vsub.f32 %v341, %v816
    %818 = vmatpush1.msra.mxu0 %v817
    %819 = vmatprep.subr.mxu0 0.0
    %v820 = vand.u32 %v342, 4294901760
    %v821 = vsub.f32 %v342, %v820
    %822 = vmatpush1.msra.mxu0 %v821
    %823 = vmatprep.subr.mxu0 0.0
    %v824 = vand.u32 %v343, 4294901760
    %v825 = vsub.f32 %v343, %v824
    %826 = vmatpush1.msra.mxu0 %v825
    %827 = vmatprep.subr.mxu0 0.0
    %v828 = vand.u32 %v344, 4294901760
    %v829 = vsub.f32 %v344, %v828
    %830 = vmatpush1.msra.mxu0 %v829
    %831 = vmatprep.subr.mxu0 0.0
    %v832 = vand.u32 %v345, 4294901760
    %v833 = vsub.f32 %v345, %v832
    %834 = vmatpush1.msra.mxu0 %v833
    %835 = vmatprep.subr.mxu0 0.0
    %v836 = vand.u32 %v346, 4294901760
    %v837 = vsub.f32 %v346, %v836
    %838 = vmatpush1.msra.mxu0 %v837
    %839 = vmatprep.subr.mxu0 0.0
    %v840 = vand.u32 %v347, 4294901760
    %v841 = vsub.f32 %v347, %v840
    %842 = vmatpush1.msra.mxu0 %v841
    %843 = vmatprep.subr.mxu0 0.0
    %v844 = vand.u32 %v348, 4294901760
    %v845 = vsub.f32 %v348, %v844
    %846 = vmatpush1.msra.mxu0 %v845
    %847 = vmatprep.subr.mxu0 0.0
    %v848 = vand.u32 %v349, 4294901760
    %v849 = vsub.f32 %v349, %v848
    %850 = vmatpush1.msra.mxu0 %v849
    %851 = vmatprep.subr.mxu0 0.0
    %v852 = vand.u32 %v350, 4294901760
    %v853 = vsub.f32 %v350, %v852
    %854 = vmatpush1.msra.mxu0 %v853
    %v855 = vand.u32 %v316, 4294901760
    %v856 = vsub.f32 %v316, %v855
    %857 = vmatprep.mubr.f32.mxu0 %v856
    %v858 = vand.u32 %v315, 4294901760
    %v859 = vsub.f32 %v315, %v858
    %860 = vmatmul.mubr.f32.gmra.mrb[0].mxu0 %v859
    %v861 = vpop.f32.mrb[0].mxu0
    %v862 = vadd.f32 %v724, %v861
    %v863 = vpop.f32.mrb[0].mxu0
    %864 = vdwg.mxu0
    %865 = vmatprep.subr.mxu0 0.0
    %v866 = vand.u32 %v319, 4294901760
    %867 = vmatpush1.msra.mxu0 %v866
    %868 = vmatprep.subr.mxu0 0.0
    %v869 = vand.u32 %v320, 4294901760
    %870 = vmatpush1.msra.mxu0 %v869
    %871 = vmatprep.subr.mxu0 0.0
    %v872 = vand.u32 %v321, 4294901760
    %873 = vmatpush1.msra.mxu0 %v872
    %874 = vmatprep.subr.mxu0 0.0
    %v875 = vand.u32 %v322, 4294901760
    %876 = vmatpush1.msra.mxu0 %v875
    %877 = vmatprep.subr.mxu0 0.0
    %v878 = vand.u32 %v323, 4294901760
    %879 = vmatpush1.msra.mxu0 %v878
    %880 = vmatprep.subr.mxu0 0.0
    %v881 = vand.u32 %v324, 4294901760
    %882 = vmatpush1.msra.mxu0 %v881
    %883 = vmatprep.subr.mxu0 0.0
    %v884 = vand.u32 %v325, 4294901760
    %885 = vmatpush1.msra.mxu0 %v884
    %886 = vmatprep.subr.mxu0 0.0
    %v887 = vand.u32 %v326, 4294901760
    %888 = vmatpush1.msra.mxu0 %v887
    %889 = vmatprep.subr.mxu0 0.0
    %v890 = vand.u32 %v327, 4294901760
    %891 = vmatpush1.msra.mxu0 %v890
    %892 = vmatprep.subr.mxu0 0.0
    %v893 = vand.u32 %v328, 4294901760
    %894 = vmatpush1.msra.mxu0 %v893
    %895 = vmatprep.subr.mxu0 0.0
    %v896 = vand.u32 %v329, 4294901760
    %897 = vmatpush1.msra.mxu0 %v896
    %898 = vmatprep.subr.mxu0 0.0
    %v899 = vand.u32 %v330, 4294901760
    %900 = vmatpush1.msra.mxu0 %v899
    %901 = vmatprep.subr.mxu0 0.0
    %v902 = vand.u32 %v331, 4294901760
    %903 = vmatpush1.msra.mxu0 %v902
    %904 = vmatprep.subr.mxu0 0.0
    %v905 = vand.u32 %v332, 4294901760
    %906 = vmatpush1.msra.mxu0 %v905
    %907 = vmatprep.subr.mxu0 0.0
    %v908 = vand.u32 %v333, 4294901760
    %909 = vmatpush1.msra.mxu0 %v908
    %910 = vmatprep.subr.mxu0 0.0
    %v911 = vand.u32 %v334, 4294901760
    %912 = vmatpush1.msra.mxu0 %v911
    %913 = vmatprep.subr.mxu0 0.0
    %v914 = vand.u32 %v335, 4294901760
    %915 = vmatpush1.msra.mxu0 %v914
    %916 = vmatprep.subr.mxu0 0.0
    %v917 = vand.u32 %v336, 4294901760
    %918 = vmatpush1.msra.mxu0 %v917
    %919 = vmatprep.subr.mxu0 0.0
    %v920 = vand.u32 %v337, 4294901760
    %921 = vmatpush1.msra.mxu0 %v920
    %922 = vmatprep.subr.mxu0 0.0
    %v923 = vand.u32 %v338, 4294901760
    %924 = vmatpush1.msra.mxu0 %v923
    %925 = vmatprep.subr.mxu0 0.0
    %v926 = vand.u32 %v339, 4294901760
    %927 = vmatpush1.msra.mxu0 %v926
    %928 = vmatprep.subr.mxu0 0.0
    %v929 = vand.u32 %v340, 4294901760
    %930 = vmatpush1.msra.mxu0 %v929
    %931 = vmatprep.subr.mxu0 0.0
    %v932 = vand.u32 %v341, 4294901760
    %933 = vmatpush1.msra.mxu0 %v932
    %934 = vmatprep.subr.mxu0 0.0
    %v935 = vand.u32 %v342, 4294901760
    %936 = vmatpush1.msra.mxu0 %v935
    %937 = vmatprep.subr.mxu0 0.0
    %v938 = vand.u32 %v343, 4294901760
    %939 = vmatpush1.msra.mxu0 %v938
    %940 = vmatprep.subr.mxu0 0.0
    %v941 = vand.u32 %v344, 4294901760
    %942 = vmatpush1.msra.mxu0 %v941
    %943 = vmatprep.subr.mxu0 0.0
    %v944 = vand.u32 %v345, 4294901760
    %945 = vmatpush1.msra.mxu0 %v944
    %946 = vmatprep.subr.mxu0 0.0
    %v947 = vand.u32 %v346, 4294901760
    %948 = vmatpush1.msra.mxu0 %v947
    %949 = vmatprep.subr.mxu0 0.0
    %v950 = vand.u32 %v347, 4294901760
    %951 = vmatpush1.msra.mxu0 %v950
    %952 = vmatprep.subr.mxu0 0.0
    %v953 = vand.u32 %v348, 4294901760
    %954 = vmatpush1.msra.mxu0 %v953
    %955 = vmatprep.subr.mxu0 0.0
    %v956 = vand.u32 %v349, 4294901760
    %957 = vmatpush1.msra.mxu0 %v956
    %958 = vmatprep.subr.mxu0 0.0
    %v959 = vand.u32 %v350, 4294901760
    %960 = vmatpush1.msra.mxu0 %v959
    %v961 = vand.u32 %v316, 4294901760
    %v962 = vsub.f32 %v316, %v961
    %v963 = vand.u32 %v962, 4294901760
    %964 = vmatprep.mubr.f32.mxu0 %v963
    %v965 = vand.u32 %v315, 4294901760
    %v966 = vsub.f32 %v315, %v965
    %v967 = vand.u32 %v966, 4294901760
    %968 = vmatmul.mubr.f32.gmra.mrb[0].mxu0 %v967
    %v969 = vpop.f32.mrb[0].mxu0
    %v970 = vadd.f32 %v862, %v969
    %v971 = vpop.f32.mrb[0].mxu0
    %972 = vdwg.mxu0
    %973 = vmatprep.subr.mxu0 0.0
    %v974 = vand.u32 %v319, 4294901760
    %v975 = vsub.f32 %v319, %v974
    %v976 = vand.u32 %v975, 4294901760
    %977 = vmatpush1.msra.mxu0 %v976
    %978 = vmatprep.subr.mxu0 0.0
    %v979 = vand.u32 %v320, 4294901760
    %v980 = vsub.f32 %v320, %v979
    %v981 = vand.u32 %v980, 4294901760
    %982 = vmatpush1.msra.mxu0 %v981
    %983 = vmatprep.subr.mxu0 0.0
    %v984 = vand.u32 %v321, 4294901760
    %v985 = vsub.f32 %v321, %v984
    %v986 = vand.u32 %v985, 4294901760
    %987 = vmatpush1.msra.mxu0 %v986
    %988 = vmatprep.subr.mxu0 0.0
    %v989 = vand.u32 %v322, 4294901760
    %v990 = vsub.f32 %v322, %v989
    %v991 = vand.u32 %v990, 4294901760
    %992 = vmatpush1.msra.mxu0 %v991
    %993 = vmatprep.subr.mxu0 0.0
    %v994 = vand.u32 %v323, 4294901760
    %v995 = vsub.f32 %v323, %v994
    %v996 = vand.u32 %v995, 4294901760
    %997 = vmatpush1.msra.mxu0 %v996
    %998 = vmatprep.subr.mxu0 0.0
    %v999 = vand.u32 %v324, 4294901760
    %v1000 = vsub.f32 %v324, %v999
    %v1001 = vand.u32 %v1000, 4294901760
    %1002 = vmatpush1.msra.mxu0 %v1001
    %1003 = vmatprep.subr.mxu0 0.0
    %v1004 = vand.u32 %v325, 4294901760
    %v1005 = vsub.f32 %v325, %v1004
    %v1006 = vand.u32 %v1005, 4294901760
    %1007 = vmatpush1.msra.mxu0 %v1006
    %1008 = vmatprep.subr.mxu0 0.0
    %v1009 = vand.u32 %v326, 4294901760
    %v1010 = vsub.f32 %v326, %v1009
    %v1011 = vand.u32 %v1010, 4294901760
    %1012 = vmatpush1.msra.mxu0 %v1011
    %1013 = vmatprep.subr.mxu0 0.0
    %v1014 = vand.u32 %v327, 4294901760
    %v1015 = vsub.f32 %v327, %v1014
    %v1016 = vand.u32 %v1015, 4294901760
    %1017 = vmatpush1.msra.mxu0 %v1016
    %1018 = vmatprep.subr.mxu0 0.0
    %v1019 = vand.u32 %v328, 4294901760
    %v1020 = vsub.f32 %v328, %v1019
    %v1021 = vand.u32 %v1020, 4294901760
    %1022 = vmatpush1.msra.mxu0 %v1021
    %1023 = vmatprep.subr.mxu0 0.0
    %v1024 = vand.u32 %v329, 4294901760
    %v1025 = vsub.f32 %v329, %v1024
    %v1026 = vand.u32 %v1025, 4294901760
    %1027 = vmatpush1.msra.mxu0 %v1026
    %1028 = vmatprep.subr.mxu0 0.0
    %v1029 = vand.u32 %v330, 4294901760
    %v1030 = vsub.f32 %v330, %v1029
    %v1031 = vand.u32 %v1030, 4294901760
    %1032 = vmatpush1.msra.mxu0 %v1031
    %1033 = vmatprep.subr.mxu0 0.0
    %v1034 = vand.u32 %v331, 4294901760
    %v1035 = vsub.f32 %v331, %v1034
    %v1036 = vand.u32 %v1035, 4294901760
    %1037 = vmatpush1.msra.mxu0 %v1036
    %1038 = vmatprep.subr.mxu0 0.0
    %v1039 = vand.u32 %v332, 4294901760
    %v1040 = vsub.f32 %v332, %v1039
    %v1041 = vand.u32 %v1040, 4294901760
    %1042 = vmatpush1.msra.mxu0 %v1041
    %1043 = vmatprep.subr.mxu0 0.0
    %v1044 = vand.u32 %v333, 4294901760
    %v1045 = vsub.f32 %v333, %v1044
    %v1046 = vand.u32 %v1045, 4294901760
    %1047 = vmatpush1.msra.mxu0 %v1046
    %1048 = vmatprep.subr.mxu0 0.0
    %v1049 = vand.u32 %v334, 4294901760
    %v1050 = vsub.f32 %v334, %v1049
    %v1051 = vand.u32 %v1050, 4294901760
    %1052 = vmatpush1.msra.mxu0 %v1051
    %1053 = vmatprep.subr.mxu0 0.0
    %v1054 = vand.u32 %v335, 4294901760
    %v1055 = vsub.f32 %v335, %v1054
    %v1056 = vand.u32 %v1055, 4294901760
    %1057 = vmatpush1.msra.mxu0 %v1056
    %1058 = vmatprep.subr.mxu0 0.0
    %v1059 = vand.u32 %v336, 4294901760
    %v1060 = vsub.f32 %v336, %v1059
    %v1061 = vand.u32 %v1060, 4294901760
    %1062 = vmatpush1.msra.mxu0 %v1061
    %1063 = vmatprep.subr.mxu0 0.0
    %v1064 = vand.u32 %v337, 4294901760
    %v1065 = vsub.f32 %v337, %v1064
    %v1066 = vand.u32 %v1065, 4294901760
    %1067 = vmatpush1.msra.mxu0 %v1066
    %1068 = vmatprep.subr.mxu0 0.0
    %v1069 = vand.u32 %v338, 4294901760
    %v1070 = vsub.f32 %v338, %v1069
    %v1071 = vand.u32 %v1070, 4294901760
    %1072 = vmatpush1.msra.mxu0 %v1071
    %1073 = vmatprep.subr.mxu0 0.0
    %v1074 = vand.u32 %v339, 4294901760
    %v1075 = vsub.f32 %v339, %v1074
    %v1076 = vand.u32 %v1075, 4294901760
    %1077 = vmatpush1.msra.mxu0 %v1076
    %1078 = vmatprep.subr.mxu0 0.0
    %v1079 = vand.u32 %v340, 4294901760
    %v1080 = vsub.f32 %v340, %v1079
    %v1081 = vand.u32 %v1080, 4294901760
    %1082 = vmatpush1.msra.mxu0 %v1081
    %1083 = vmatprep.subr.mxu0 0.0
    %v1084 = vand.u32 %v341, 4294901760
    %v1085 = vsub.f32 %v341, %v1084
    %v1086 = vand.u32 %v1085, 4294901760
    %1087 = vmatpush1.msra.mxu0 %v1086
    %1088 = vmatprep.subr.mxu0 0.0
    %v1089 = vand.u32 %v342, 4294901760
    %v1090 = vsub.f32 %v342, %v1089
    %v1091 = vand.u32 %v1090, 4294901760
    %1092 = vmatpush1.msra.mxu0 %v1091
    %1093 = vmatprep.subr.mxu0 0.0
    %v1094 = vand.u32 %v343, 4294901760
    %v1095 = vsub.f32 %v343, %v1094
    %v1096 = vand.u32 %v1095, 4294901760
    %1097 = vmatpush1.msra.mxu0 %v1096
    %1098 = vmatprep.subr.mxu0 0.0
    %v1099 = vand.u32 %v344, 4294901760
    %v1100 = vsub.f32 %v344, %v1099
    %v1101 = vand.u32 %v1100, 4294901760
    %1102 = vmatpush1.msra.mxu0 %v1101
    %1103 = vmatprep.subr.mxu0 0.0
    %v1104 = vand.u32 %v345, 4294901760
    %v1105 = vsub.f32 %v345, %v1104
    %v1106 = vand.u32 %v1105, 4294901760
    %1107 = vmatpush1.msra.mxu0 %v1106
    %1108 = vmatprep.subr.mxu0 0.0
    %v1109 = vand.u32 %v346, 4294901760
    %v1110 = vsub.f32 %v346, %v1109
    %v1111 = vand.u32 %v1110, 4294901760
    %1112 = vmatpush1.msra.mxu0 %v1111
    %1113 = vmatprep.subr.mxu0 0.0
    %v1114 = vand.u32 %v347, 4294901760
    %v1115 = vsub.f32 %v347, %v1114
    %v1116 = vand.u32 %v1115, 4294901760
    %1117 = vmatpush1.msra.mxu0 %v1116
    %1118 = vmatprep.subr.mxu0 0.0
    %v1119 = vand.u32 %v348, 4294901760
    %v1120 = vsub.f32 %v348, %v1119
    %v1121 = vand.u32 %v1120, 4294901760
    %1122 = vmatpush1.msra.mxu0 %v1121
    %1123 = vmatprep.subr.mxu0 0.0
    %v1124 = vand.u32 %v349, 4294901760
    %v1125 = vsub.f32 %v349, %v1124
    %v1126 = vand.u32 %v1125, 4294901760
    %1127 = vmatpush1.msra.mxu0 %v1126
    %1128 = vmatprep.subr.mxu0 0.0
    %v1129 = vand.u32 %v350, 4294901760
    %v1130 = vsub.f32 %v350, %v1129
    %v1131 = vand.u32 %v1130, 4294901760
    %1132 = vmatpush1.msra.mxu0 %v1131
    %v1133 = vand.u32 %v316, 4294901760
    %1134 = vmatprep.mubr.f32.mxu0 %v1133
    %v1135 = vand.u32 %v315, 4294901760
    %1136 = vmatmul.mubr.f32.gmra.mrb[0].mxu0 %v1135
    %v1137 = vpop.f32.mrb[0].mxu0
    %v1138 = vadd.f32 %v970, %v1137
    %v1139 = vpop.f32.mrb[0].mxu0
    %1140 = vdwg.mxu0
    %1141 = vmatprep.subr.mxu0 0.0
    %v1142 = vand.u32 %v319, 4294901760
    %1143 = vmatpush1.msra.mxu0 %v1142
    %1144 = vmatprep.subr.mxu0 0.0
    %v1145 = vand.u32 %v320, 4294901760
    %1146 = vmatpush1.msra.mxu0 %v1145
    %1147 = vmatprep.subr.mxu0 0.0
    %v1148 = vand.u32 %v321, 4294901760
    %1149 = vmatpush1.msra.mxu0 %v1148
    %1150 = vmatprep.subr.mxu0 0.0
    %v1151 = vand.u32 %v322, 4294901760
    %1152 = vmatpush1.msra.mxu0 %v1151
    %1153 = vmatprep.subr.mxu0 0.0
    %v1154 = vand.u32 %v323, 4294901760
    %1155 = vmatpush1.msra.mxu0 %v1154
    %1156 = vmatprep.subr.mxu0 0.0
    %v1157 = vand.u32 %v324, 4294901760
    %1158 = vmatpush1.msra.mxu0 %v1157
    %1159 = vmatprep.subr.mxu0 0.0
    %v1160 = vand.u32 %v325, 4294901760
    %1161 = vmatpush1.msra.mxu0 %v1160
    %1162 = vmatprep.subr.mxu0 0.0
    %v1163 = vand.u32 %v326, 4294901760
    %1164 = vmatpush1.msra.mxu0 %v1163
    %1165 = vmatprep.subr.mxu0 0.0
    %v1166 = vand.u32 %v327, 4294901760
    %1167 = vmatpush1.msra.mxu0 %v1166
    %1168 = vmatprep.subr.mxu0 0.0
    %v1169 = vand.u32 %v328, 4294901760
    %1170 = vmatpush1.msra.mxu0 %v1169
    %1171 = vmatprep.subr.mxu0 0.0
    %v1172 = vand.u32 %v329, 4294901760
    %1173 = vmatpush1.msra.mxu0 %v1172
    %1174 = vmatprep.subr.mxu0 0.0
    %v1175 = vand.u32 %v330, 4294901760
    %1176 = vmatpush1.msra.mxu0 %v1175
    %1177 = vmatprep.subr.mxu0 0.0
    %v1178 = vand.u32 %v331, 4294901760
    %1179 = vmatpush1.msra.mxu0 %v1178
    %1180 = vmatprep.subr.mxu0 0.0
    %v1181 = vand.u32 %v332, 4294901760
    %1182 = vmatpush1.msra.mxu0 %v1181
    %1183 = vmatprep.subr.mxu0 0.0
    %v1184 = vand.u32 %v333, 4294901760
    %1185 = vmatpush1.msra.mxu0 %v1184
    %1186 = vmatprep.subr.mxu0 0.0
    %v1187 = vand.u32 %v334, 4294901760
    %1188 = vmatpush1.msra.mxu0 %v1187
    %1189 = vmatprep.subr.mxu0 0.0
    %v1190 = vand.u32 %v335, 4294901760
    %1191 = vmatpush1.msra.mxu0 %v1190
    %1192 = vmatprep.subr.mxu0 0.0
    %v1193 = vand.u32 %v336, 4294901760
    %1194 = vmatpush1.msra.mxu0 %v1193
    %1195 = vmatprep.subr.mxu0 0.0
    %v1196 = vand.u32 %v337, 4294901760
    %1197 = vmatpush1.msra.mxu0 %v1196
    %1198 = vmatprep.subr.mxu0 0.0
    %v1199 = vand.u32 %v338, 4294901760
    %1200 = vmatpush1.msra.mxu0 %v1199
    %1201 = vmatprep.subr.mxu0 0.0
    %v1202 = vand.u32 %v339, 4294901760
    %1203 = vmatpush1.msra.mxu0 %v1202
    %1204 = vmatprep.subr.mxu0 0.0
    %v1205 = vand.u32 %v340, 4294901760
    %1206 = vmatpush1.msra.mxu0 %v1205
    %1207 = vmatprep.subr.mxu0 0.0
    %v1208 = vand.u32 %v341, 4294901760
    %1209 = vmatpush1.msra.mxu0 %v1208
    %1210 = vmatprep.subr.mxu0 0.0
    %v1211 = vand.u32 %v342, 4294901760
    %1212 = vmatpush1.msra.mxu0 %v1211
    %1213 = vmatprep.subr.mxu0 0.0
    %v1214 = vand.u32 %v343, 4294901760
    %1215 = vmatpush1.msra.mxu0 %v1214
    %1216 = vmatprep.subr.mxu0 0.0
    %v1217 = vand.u32 %v344, 4294901760
    %1218 = vmatpush1.msra.mxu0 %v1217
    %1219 = vmatprep.subr.mxu0 0.0
    %v1220 = vand.u32 %v345, 4294901760
    %1221 = vmatpush1.msra.mxu0 %v1220
    %1222 = vmatprep.subr.mxu0 0.0
    %v1223 = vand.u32 %v346, 4294901760
    %1224 = vmatpush1.msra.mxu0 %v1223
    %1225 = vmatprep.subr.mxu0 0.0
    %v1226 = vand.u32 %v347, 4294901760
    %1227 = vmatpush1.msra.mxu0 %v1226
    %1228 = vmatprep.subr.mxu0 0.0
    %v1229 = vand.u32 %v348, 4294901760
    %1230 = vmatpush1.msra.mxu0 %v1229
    %1231 = vmatprep.subr.mxu0 0.0
    %v1232 = vand.u32 %v349, 4294901760
    %1233 = vmatpush1.msra.mxu0 %v1232
    %1234 = vmatprep.subr.mxu0 0.0
    %v1235 = vand.u32 %v350, 4294901760
    %1236 = vmatpush1.msra.mxu0 %v1235
    %v1237 = vand.u32 %v316, 4294901760
    %1238 = vmatprep.mubr.f32.mxu0 %v1237
    %v1239 = vand.u32 %v315, 4294901760
    %1240 = vmatmul.mubr.f32.gmra.mrb[0].mxu0 %v1239
    %v1241 = vpop.f32.mrb[0].mxu0
    %v1242 = vadd.f32 %v1138, %v1241
    %v1243 = vpop.f32.mrb[0].mxu0
    %1244 = vdwg.mxu0
    %1245 = vmatprep.subr.mxu0 0.0
    %v1246 = vand.u32 %v351, 4294901760
    %1247 = vmatpush1.msra.mxu0 %v1246
    %1248 = vmatprep.subr.mxu0 0.0
    %v1249 = vand.u32 %v352, 4294901760
    %1250 = vmatpush1.msra.mxu0 %v1249
    %1251 = vmatprep.subr.mxu0 0.0
    %v1252 = vand.u32 %v353, 4294901760
    %1253 = vmatpush1.msra.mxu0 %v1252
    %1254 = vmatprep.subr.mxu0 0.0
    %v1255 = vand.u32 %v354, 4294901760
    %1256 = vmatpush1.msra.mxu0 %v1255
    %1257 = vmatprep.subr.mxu0 0.0
    %v1258 = vand.u32 %v355, 4294901760
    %1259 = vmatpush1.msra.mxu0 %v1258
    %1260 = vmatprep.subr.mxu0 0.0
    %v1261 = vand.u32 %v356, 4294901760
    %1262 = vmatpush1.msra.mxu0 %v1261
    %1263 = vmatprep.subr.mxu0 0.0
    %v1264 = vand.u32 %v357, 4294901760
    %1265 = vmatpush1.msra.mxu0 %v1264
    %1266 = vmatprep.subr.mxu0 0.0
    %v1267 = vand.u32 %v358, 4294901760
    %1268 = vmatpush1.msra.mxu0 %v1267
    %1269 = vmatprep.subr.mxu0 0.0
    %v1270 = vand.u32 %v359, 4294901760
    %1271 = vmatpush1.msra.mxu0 %v1270
    %1272 = vmatprep.subr.mxu0 0.0
    %v1273 = vand.u32 %v360, 4294901760
    %1274 = vmatpush1.msra.mxu0 %v1273
    %1275 = vmatprep.subr.mxu0 0.0
    %v1276 = vand.u32 %v361, 4294901760
    %1277 = vmatpush1.msra.mxu0 %v1276
    %1278 = vmatprep.subr.mxu0 0.0
    %v1279 = vand.u32 %v362, 4294901760
    %1280 = vmatpush1.msra.mxu0 %v1279
    %1281 = vmatprep.subr.mxu0 0.0
    %v1282 = vand.u32 %v363, 4294901760
    %1283 = vmatpush1.msra.mxu0 %v1282
    %1284 = vmatprep.subr.mxu0 0.0
    %v1285 = vand.u32 %v364, 4294901760
    %1286 = vmatpush1.msra.mxu0 %v1285
    %1287 = vmatprep.subr.mxu0 0.0
    %v1288 = vand.u32 %v365, 4294901760
    %1289 = vmatpush1.msra.mxu0 %v1288
    %1290 = vmatprep.subr.mxu0 0.0
    %v1291 = vand.u32 %v366, 4294901760
    %1292 = vmatpush1.msra.mxu0 %v1291
    %1293 = vmatprep.subr.mxu0 0.0
    %v1294 = vand.u32 %v367, 4294901760
    %1295 = vmatpush1.msra.mxu0 %v1294
    %1296 = vmatprep.subr.mxu0 0.0
    %v1297 = vand.u32 %v368, 4294901760
    %1298 = vmatpush1.msra.mxu0 %v1297
    %1299 = vmatprep.subr.mxu0 0.0
    %v1300 = vand.u32 %v369, 4294901760
    %1301 = vmatpush1.msra.mxu0 %v1300
    %1302 = vmatprep.subr.mxu0 0.0
    %v1303 = vand.u32 %v370, 4294901760
    %1304 = vmatpush1.msra.mxu0 %v1303
    %1305 = vmatprep.subr.mxu0 0.0
    %v1306 = vand.u32 %v371, 4294901760
    %1307 = vmatpush1.msra.mxu0 %v1306
    %1308 = vmatprep.subr.mxu0 0.0
    %v1309 = vand.u32 %v372, 4294901760
    %1310 = vmatpush1.msra.mxu0 %v1309
    %1311 = vmatprep.subr.mxu0 0.0
    %v1312 = vand.u32 %v373, 4294901760
    %1313 = vmatpush1.msra.mxu0 %v1312
    %1314 = vmatprep.subr.mxu0 0.0
    %v1315 = vand.u32 %v374, 4294901760
    %1316 = vmatpush1.msra.mxu0 %v1315
    %1317 = vmatprep.subr.mxu0 0.0
    %v1318 = vand.u32 %v375, 4294901760
    %1319 = vmatpush1.msra.mxu0 %v1318
    %1320 = vmatprep.subr.mxu0 0.0
    %v1321 = vand.u32 %v376, 4294901760
    %1322 = vmatpush1.msra.mxu0 %v1321
    %1323 = vmatprep.subr.mxu0 0.0
    %v1324 = vand.u32 %v377, 4294901760
    %1325 = vmatpush1.msra.mxu0 %v1324
    %1326 = vmatprep.subr.mxu0 0.0
    %v1327 = vand.u32 %v378, 4294901760
    %1328 = vmatpush1.msra.mxu0 %v1327
    %1329 = vmatprep.subr.mxu0 0.0
    %v1330 = vand.u32 %v379, 4294901760
    %1331 = vmatpush1.msra.mxu0 %v1330
    %1332 = vmatprep.subr.mxu0 0.0
    %v1333 = vand.u32 %v380, 4294901760
    %1334 = vmatpush1.msra.mxu0 %v1333
    %1335 = vmatprep.subr.mxu0 0.0
    %v1336 = vand.u32 %v381, 4294901760
    %1337 = vmatpush1.msra.mxu0 %v1336
    %1338 = vmatprep.subr.mxu0 0.0
    %v1339 = vand.u32 %v382, 4294901760
    %1340 = vmatpush1.msra.mxu0 %v1339
    %v1341 = vand.u32 %v318, 4294901760
    %v1342 = vsub.f32 %v318, %v1341
    %v1343 = vand.u32 %v1342, 4294901760
    %v1344 = vsub.f32 %v1342, %v1343
    %v1345 = vand.u32 %v1344, 4294901760
    %1346 = vmatprep.mubr.f32.mxu0 %v1345
    %v1347 = vand.u32 %v317, 4294901760
    %v1348 = vsub.f32 %v317, %v1347
    %v1349 = vand.u32 %v1348, 4294901760
    %v1350 = vsub.f32 %v1348, %v1349
    %v1351 = vand.u32 %v1350, 4294901760
    %1352 = vmatmul.mubr.f32.gmra.mrb[0].mxu0 %v1351
    %v1353 = vpop.f32.mrb[0].mxu0
    %v1354 = vadd.f32 %v1242, %v1353
    %v1355 = vpop.f32.mrb[0].mxu0
    %1356 = vdwg.mxu0
    %1357 = vmatprep.subr.mxu0 0.0
    %v1358 = vand.u32 %v351, 4294901760
    %v1359 = vsub.f32 %v351, %v1358
    %v1360 = vand.u32 %v1359, 4294901760
    %v1361 = vsub.f32 %v1359, %v1360
    %v1362 = vand.u32 %v1361, 4294901760
    %1363 = vmatpush1.msra.mxu0 %v1362
    %1364 = vmatprep.subr.mxu0 0.0
    %v1365 = vand.u32 %v352, 4294901760
    %v1366 = vsub.f32 %v352, %v1365
    %v1367 = vand.u32 %v1366, 4294901760
    %v1368 = vsub.f32 %v1366, %v1367
    %v1369 = vand.u32 %v1368, 4294901760
    %1370 = vmatpush1.msra.mxu0 %v1369
    %1371 = vmatprep.subr.mxu0 0.0
    %v1372 = vand.u32 %v353, 4294901760
    %v1373 = vsub.f32 %v353, %v1372
    %v1374 = vand.u32 %v1373, 4294901760
    %v1375 = vsub.f32 %v1373, %v1374
    %v1376 = vand.u32 %v1375, 4294901760
    %1377 = vmatpush1.msra.mxu0 %v1376
    %1378 = vmatprep.subr.mxu0 0.0
    %v1379 = vand.u32 %v354, 4294901760
    %v1380 = vsub.f32 %v354, %v1379
    %v1381 = vand.u32 %v1380, 4294901760
    %v1382 = vsub.f32 %v1380, %v1381
    %v1383 = vand.u32 %v1382, 4294901760
    %1384 = vmatpush1.msra.mxu0 %v1383
    %1385 = vmatprep.subr.mxu0 0.0
    %v1386 = vand.u32 %v355, 4294901760
    %v1387 = vsub.f32 %v355, %v1386
    %v1388 = vand.u32 %v1387, 4294901760
    %v1389 = vsub.f32 %v1387, %v1388
    %v1390 = vand.u32 %v1389, 4294901760
    %1391 = vmatpush1.msra.mxu0 %v1390
    %1392 = vmatprep.subr.mxu0 0.0
    %v1393 = vand.u32 %v356, 4294901760
    %v1394 = vsub.f32 %v356, %v1393
    %v1395 = vand.u32 %v1394, 4294901760
    %v1396 = vsub.f32 %v1394, %v1395
    %v1397 = vand.u32 %v1396, 4294901760
    %1398 = vmatpush1.msra.mxu0 %v1397
    %1399 = vmatprep.subr.mxu0 0.0
    %v1400 = vand.u32 %v357, 4294901760
    %v1401 = vsub.f32 %v357, %v1400
    %v1402 = vand.u32 %v1401, 4294901760
    %v1403 = vsub.f32 %v1401, %v1402
    %v1404 = vand.u32 %v1403, 4294901760
    %1405 = vmatpush1.msra.mxu0 %v1404
    %1406 = vmatprep.subr.mxu0 0.0
    %v1407 = vand.u32 %v358, 4294901760
    %v1408 = vsub.f32 %v358, %v1407
    %v1409 = vand.u32 %v1408, 4294901760
    %v1410 = vsub.f32 %v1408, %v1409
    %v1411 = vand.u32 %v1410, 4294901760
    %1412 = vmatpush1.msra.mxu0 %v1411
    %1413 = vmatprep.subr.mxu0 0.0
    %v1414 = vand.u32 %v359, 4294901760
    %v1415 = vsub.f32 %v359, %v1414
    %v1416 = vand.u32 %v1415, 4294901760
    %v1417 = vsub.f32 %v1415, %v1416
    %v1418 = vand.u32 %v1417, 4294901760
    %1419 = vmatpush1.msra.mxu0 %v1418
    %1420 = vmatprep.subr.mxu0 0.0
    %v1421 = vand.u32 %v360, 4294901760
    %v1422 = vsub.f32 %v360, %v1421
    %v1423 = vand.u32 %v1422, 4294901760
    %v1424 = vsub.f32 %v1422, %v1423
    %v1425 = vand.u32 %v1424, 4294901760
    %1426 = vmatpush1.msra.mxu0 %v1425
    %1427 = vmatprep.subr.mxu0 0.0
    %v1428 = vand.u32 %v361, 4294901760
    %v1429 = vsub.f32 %v361, %v1428
    %v1430 = vand.u32 %v1429, 4294901760
    %v1431 = vsub.f32 %v1429, %v1430
    %v1432 = vand.u32 %v1431, 4294901760
    %1433 = vmatpush1.msra.mxu0 %v1432
    %1434 = vmatprep.subr.mxu0 0.0
    %v1435 = vand.u32 %v362, 4294901760
    %v1436 = vsub.f32 %v362, %v1435
    %v1437 = vand.u32 %v1436, 4294901760
    %v1438 = vsub.f32 %v1436, %v1437
    %v1439 = vand.u32 %v1438, 4294901760
    %1440 = vmatpush1.msra.mxu0 %v1439
    %1441 = vmatprep.subr.mxu0 0.0
    %v1442 = vand.u32 %v363, 4294901760
    %v1443 = vsub.f32 %v363, %v1442
    %v1444 = vand.u32 %v1443, 4294901760
    %v1445 = vsub.f32 %v1443, %v1444
    %v1446 = vand.u32 %v1445, 4294901760
    %1447 = vmatpush1.msra.mxu0 %v1446
    %1448 = vmatprep.subr.mxu0 0.0
    %v1449 = vand.u32 %v364, 4294901760
    %v1450 = vsub.f32 %v364, %v1449
    %v1451 = vand.u32 %v1450, 4294901760
    %v1452 = vsub.f32 %v1450, %v1451
    %v1453 = vand.u32 %v1452, 4294901760
    %1454 = vmatpush1.msra.mxu0 %v1453
    %1455 = vmatprep.subr.mxu0 0.0
    %v1456 = vand.u32 %v365, 4294901760
    %v1457 = vsub.f32 %v365, %v1456
    %v1458 = vand.u32 %v1457, 4294901760
    %v1459 = vsub.f32 %v1457, %v1458
    %v1460 = vand.u32 %v1459, 4294901760
    %1461 = vmatpush1.msra.mxu0 %v1460
    %1462 = vmatprep.subr.mxu0 0.0
    %v1463 = vand.u32 %v366, 4294901760
    %v1464 = vsub.f32 %v366, %v1463
    %v1465 = vand.u32 %v1464, 4294901760
    %v1466 = vsub.f32 %v1464, %v1465
    %v1467 = vand.u32 %v1466, 4294901760
    %1468 = vmatpush1.msra.mxu0 %v1467
    %1469 = vmatprep.subr.mxu0 0.0
    %v1470 = vand.u32 %v367, 4294901760
    %v1471 = vsub.f32 %v367, %v1470
    %v1472 = vand.u32 %v1471, 4294901760
    %v1473 = vsub.f32 %v1471, %v1472
    %v1474 = vand.u32 %v1473, 4294901760
    %1475 = vmatpush1.msra.mxu0 %v1474
    %1476 = vmatprep.subr.mxu0 0.0
    %v1477 = vand.u32 %v368, 4294901760
    %v1478 = vsub.f32 %v368, %v1477
    %v1479 = vand.u32 %v1478, 4294901760
    %v1480 = vsub.f32 %v1478, %v1479
    %v1481 = vand.u32 %v1480, 4294901760
    %1482 = vmatpush1.msra.mxu0 %v1481
    %1483 = vmatprep.subr.mxu0 0.0
    %v1484 = vand.u32 %v369, 4294901760
    %v1485 = vsub.f32 %v369, %v1484
    %v1486 = vand.u32 %v1485, 4294901760
    %v1487 = vsub.f32 %v1485, %v1486
    %v1488 = vand.u32 %v1487, 4294901760
    %1489 = vmatpush1.msra.mxu0 %v1488
    %1490 = vmatprep.subr.mxu0 0.0
    %v1491 = vand.u32 %v370, 4294901760
    %v1492 = vsub.f32 %v370, %v1491
    %v1493 = vand.u32 %v1492, 4294901760
    %v1494 = vsub.f32 %v1492, %v1493
    %v1495 = vand.u32 %v1494, 4294901760
    %1496 = vmatpush1.msra.mxu0 %v1495
    %1497 = vmatprep.subr.mxu0 0.0
    %v1498 = vand.u32 %v371, 4294901760
    %v1499 = vsub.f32 %v371, %v1498
    %v1500 = vand.u32 %v1499, 4294901760
    %v1501 = vsub.f32 %v1499, %v1500
    %v1502 = vand.u32 %v1501, 4294901760
    %1503 = vmatpush1.msra.mxu0 %v1502
    %1504 = vmatprep.subr.mxu0 0.0
    %v1505 = vand.u32 %v372, 4294901760
    %v1506 = vsub.f32 %v372, %v1505
    %v1507 = vand.u32 %v1506, 4294901760
    %v1508 = vsub.f32 %v1506, %v1507
    %v1509 = vand.u32 %v1508, 4294901760
    %1510 = vmatpush1.msra.mxu0 %v1509
    %1511 = vmatprep.subr.mxu0 0.0
    %v1512 = vand.u32 %v373, 4294901760
    %v1513 = vsub.f32 %v373, %v1512
    %v1514 = vand.u32 %v1513, 4294901760
    %v1515 = vsub.f32 %v1513, %v1514
    %v1516 = vand.u32 %v1515, 4294901760
    %1517 = vmatpush1.msra.mxu0 %v1516
    %1518 = vmatprep.subr.mxu0 0.0
    %v1519 = vand.u32 %v374, 4294901760
    %v1520 = vsub.f32 %v374, %v1519
    %v1521 = vand.u32 %v1520, 4294901760
    %v1522 = vsub.f32 %v1520, %v1521
    %v1523 = vand.u32 %v1522, 4294901760
    %1524 = vmatpush1.msra.mxu0 %v1523
    %1525 = vmatprep.subr.mxu0 0.0
    %v1526 = vand.u32 %v375, 4294901760
    %v1527 = vsub.f32 %v375, %v1526
    %v1528 = vand.u32 %v1527, 4294901760
    %v1529 = vsub.f32 %v1527, %v1528
    %v1530 = vand.u32 %v1529, 4294901760
    %1531 = vmatpush1.msra.mxu0 %v1530
    %1532 = vmatprep.subr.mxu0 0.0
    %v1533 = vand.u32 %v376, 4294901760
    %v1534 = vsub.f32 %v376, %v1533
    %v1535 = vand.u32 %v1534, 4294901760
    %v1536 = vsub.f32 %v1534, %v1535
    %v1537 = vand.u32 %v1536, 4294901760
    %1538 = vmatpush1.msra.mxu0 %v1537
    %1539 = vmatprep.subr.mxu0 0.0
    %v1540 = vand.u32 %v377, 4294901760
    %v1541 = vsub.f32 %v377, %v1540
    %v1542 = vand.u32 %v1541, 4294901760
    %v1543 = vsub.f32 %v1541, %v1542
    %v1544 = vand.u32 %v1543, 4294901760
    %1545 = vmatpush1.msra.mxu0 %v1544
    %1546 = vmatprep.subr.mxu0 0.0
    %v1547 = vand.u32 %v378, 4294901760
    %v1548 = vsub.f32 %v378, %v1547
    %v1549 = vand.u32 %v1548, 4294901760
    %v1550 = vsub.f32 %v1548, %v1549
    %v1551 = vand.u32 %v1550, 4294901760
    %1552 = vmatpush1.msra.mxu0 %v1551
    %1553 = vmatprep.subr.mxu0 0.0
    %v1554 = vand.u32 %v379, 4294901760
    %v1555 = vsub.f32 %v379, %v1554
    %v1556 = vand.u32 %v1555, 4294901760
    %v1557 = vsub.f32 %v1555, %v1556
    %v1558 = vand.u32 %v1557, 4294901760
    %1559 = vmatpush1.msra.mxu0 %v1558
    %1560 = vmatprep.subr.mxu0 0.0
    %v1561 = vand.u32 %v380, 4294901760
    %v1562 = vsub.f32 %v380, %v1561
    %v1563 = vand.u32 %v1562, 4294901760
    %v1564 = vsub.f32 %v1562, %v1563
    %v1565 = vand.u32 %v1564, 4294901760
    %1566 = vmatpush1.msra.mxu0 %v1565
    %1567 = vmatprep.subr.mxu0 0.0
    %v1568 = vand.u32 %v381, 4294901760
    %v1569 = vsub.f32 %v381, %v1568
    %v1570 = vand.u32 %v1569, 4294901760
    %v1571 = vsub.f32 %v1569, %v1570
    %v1572 = vand.u32 %v1571, 4294901760
    %1573 = vmatpush1.msra.mxu0 %v1572
    %1574 = vmatprep.subr.mxu0 0.0
    %v1575 = vand.u32 %v382, 4294901760
    %v1576 = vsub.f32 %v382, %v1575
    %v1577 = vand.u32 %v1576, 4294901760
    %v1578 = vsub.f32 %v1576, %v1577
    %v1579 = vand.u32 %v1578, 4294901760
    %1580 = vmatpush1.msra.mxu0 %v1579
    %v1581 = vand.u32 %v318, 4294901760
    %1582 = vmatprep.mubr.f32.mxu0 %v1581
    %v1583 = vand.u32 %v317, 4294901760
    %1584 = vmatmul.mubr.f32.gmra.mrb[0].mxu0 %v1583
    %v1585 = vpop.f32.mrb[0].mxu0
    %v1586 = vadd.f32 %v1354, %v1585
    %v1587 = vpop.f32.mrb[0].mxu0
    %1588 = vdwg.mxu0
    %1589 = vmatprep.subr.mxu0 0.0
    %v1590 = vand.u32 %v351, 4294901760
    %v1591 = vsub.f32 %v351, %v1590
    %1592 = vmatpush1.msra.mxu0 %v1591
    %1593 = vmatprep.subr.mxu0 0.0
    %v1594 = vand.u32 %v352, 4294901760
    %v1595 = vsub.f32 %v352, %v1594
    %1596 = vmatpush1.msra.mxu0 %v1595
    %1597 = vmatprep.subr.mxu0 0.0
    %v1598 = vand.u32 %v353, 4294901760
    %v1599 = vsub.f32 %v353, %v1598
    %1600 = vmatpush1.msra.mxu0 %v1599
    %1601 = vmatprep.subr.mxu0 0.0
    %v1602 = vand.u32 %v354, 4294901760
    %v1603 = vsub.f32 %v354, %v1602
    %1604 = vmatpush1.msra.mxu0 %v1603
    %1605 = vmatprep.subr.mxu0 0.0
    %v1606 = vand.u32 %v355, 4294901760
    %v1607 = vsub.f32 %v355, %v1606
    %1608 = vmatpush1.msra.mxu0 %v1607
    %1609 = vmatprep.subr.mxu0 0.0
    %v1610 = vand.u32 %v356, 4294901760
    %v1611 = vsub.f32 %v356, %v1610
    %1612 = vmatpush1.msra.mxu0 %v1611
    %1613 = vmatprep.subr.mxu0 0.0
    %v1614 = vand.u32 %v357, 4294901760
    %v1615 = vsub.f32 %v357, %v1614
    %1616 = vmatpush1.msra.mxu0 %v1615
    %1617 = vmatprep.subr.mxu0 0.0
    %v1618 = vand.u32 %v358, 4294901760
    %v1619 = vsub.f32 %v358, %v1618
    %1620 = vmatpush1.msra.mxu0 %v1619
    %1621 = vmatprep.subr.mxu0 0.0
    %v1622 = vand.u32 %v359, 4294901760
    %v1623 = vsub.f32 %v359, %v1622
    %1624 = vmatpush1.msra.mxu0 %v1623
    %1625 = vmatprep.subr.mxu0 0.0
    %v1626 = vand.u32 %v360, 4294901760
    %v1627 = vsub.f32 %v360, %v1626
    %1628 = vmatpush1.msra.mxu0 %v1627
    %1629 = vmatprep.subr.mxu0 0.0
    %v1630 = vand.u32 %v361, 4294901760
    %v1631 = vsub.f32 %v361, %v1630
    %1632 = vmatpush1.msra.mxu0 %v1631
    %1633 = vmatprep.subr.mxu0 0.0
    %v1634 = vand.u32 %v362, 4294901760
    %v1635 = vsub.f32 %v362, %v1634
    %1636 = vmatpush1.msra.mxu0 %v1635
    %1637 = vmatprep.subr.mxu0 0.0
    %v1638 = vand.u32 %v363, 4294901760
    %v1639 = vsub.f32 %v363, %v1638
    %1640 = vmatpush1.msra.mxu0 %v1639
    %1641 = vmatprep.subr.mxu0 0.0
    %v1642 = vand.u32 %v364, 4294901760
    %v1643 = vsub.f32 %v364, %v1642
    %1644 = vmatpush1.msra.mxu0 %v1643
    %1645 = vmatprep.subr.mxu0 0.0
    %v1646 = vand.u32 %v365, 4294901760
    %v1647 = vsub.f32 %v365, %v1646
    %1648 = vmatpush1.msra.mxu0 %v1647
    %1649 = vmatprep.subr.mxu0 0.0
    %v1650 = vand.u32 %v366, 4294901760
    %v1651 = vsub.f32 %v366, %v1650
    %1652 = vmatpush1.msra.mxu0 %v1651
    %1653 = vmatprep.subr.mxu0 0.0
    %v1654 = vand.u32 %v367, 4294901760
    %v1655 = vsub.f32 %v367, %v1654
    %1656 = vmatpush1.msra.mxu0 %v1655
    %1657 = vmatprep.subr.mxu0 0.0
    %v1658 = vand.u32 %v368, 4294901760
    %v1659 = vsub.f32 %v368, %v1658
    %1660 = vmatpush1.msra.mxu0 %v1659
    %1661 = vmatprep.subr.mxu0 0.0
    %v1662 = vand.u32 %v369, 4294901760
    %v1663 = vsub.f32 %v369, %v1662
    %1664 = vmatpush1.msra.mxu0 %v1663
    %1665 = vmatprep.subr.mxu0 0.0
    %v1666 = vand.u32 %v370, 4294901760
    %v1667 = vsub.f32 %v370, %v1666
    %1668 = vmatpush1.msra.mxu0 %v1667
    %1669 = vmatprep.subr.mxu0 0.0
    %v1670 = vand.u32 %v371, 4294901760
    %v1671 = vsub.f32 %v371, %v1670
    %1672 = vmatpush1.msra.mxu0 %v1671
    %1673 = vmatprep.subr.mxu0 0.0
    %v1674 = vand.u32 %v372, 4294901760
    %v1675 = vsub.f32 %v372, %v1674
    %1676 = vmatpush1.msra.mxu0 %v1675
    %1677 = vmatprep.subr.mxu0 0.0
    %v1678 = vand.u32 %v373, 4294901760
    %v1679 = vsub.f32 %v373, %v1678
    %1680 = vmatpush1.msra.mxu0 %v1679
    %1681 = vmatprep.subr.mxu0 0.0
    %v1682 = vand.u32 %v374, 4294901760
    %v1683 = vsub.f32 %v374, %v1682
    %1684 = vmatpush1.msra.mxu0 %v1683
    %1685 = vmatprep.subr.mxu0 0.0
    %v1686 = vand.u32 %v375, 4294901760
    %v1687 = vsub.f32 %v375, %v1686
    %1688 = vmatpush1.msra.mxu0 %v1687
    %1689 = vmatprep.subr.mxu0 0.0
    %v1690 = vand.u32 %v376, 4294901760
    %v1691 = vsub.f32 %v376, %v1690
    %1692 = vmatpush1.msra.mxu0 %v1691
    %1693 = vmatprep.subr.mxu0 0.0
    %v1694 = vand.u32 %v377, 4294901760
    %v1695 = vsub.f32 %v377, %v1694
    %1696 = vmatpush1.msra.mxu0 %v1695
    %1697 = vmatprep.subr.mxu0 0.0
    %v1698 = vand.u32 %v378, 4294901760
    %v1699 = vsub.f32 %v378, %v1698
    %1700 = vmatpush1.msra.mxu0 %v1699
    %1701 = vmatprep.subr.mxu0 0.0
    %v1702 = vand.u32 %v379, 4294901760
    %v1703 = vsub.f32 %v379, %v1702
    %1704 = vmatpush1.msra.mxu0 %v1703
    %1705 = vmatprep.subr.mxu0 0.0
    %v1706 = vand.u32 %v380, 4294901760
    %v1707 = vsub.f32 %v380, %v1706
    %1708 = vmatpush1.msra.mxu0 %v1707
    %1709 = vmatprep.subr.mxu0 0.0
    %v1710 = vand.u32 %v381, 4294901760
    %v1711 = vsub.f32 %v381, %v1710
    %1712 = vmatpush1.msra.mxu0 %v1711
    %1713 = vmatprep.subr.mxu0 0.0
    %v1714 = vand.u32 %v382, 4294901760
    %v1715 = vsub.f32 %v382, %v1714
    %1716 = vmatpush1.msra.mxu0 %v1715
    %v1717 = vand.u32 %v318, 4294901760
    %v1718 = vsub.f32 %v318, %v1717
    %1719 = vmatprep.mubr.f32.mxu0 %v1718
    %v1720 = vand.u32 %v317, 4294901760
    %v1721 = vsub.f32 %v317, %v1720
    %1722 = vmatmul.mubr.f32.gmra.mrb[0].mxu0 %v1721
    %v1723 = vpop.f32.mrb[0].mxu0
    %v1724 = vadd.f32 %v1586, %v1723
    %v1725 = vpop.f32.mrb[0].mxu0
    %1726 = vdwg.mxu0
    %1727 = vmatprep.subr.mxu0 0.0
    %v1728 = vand.u32 %v351, 4294901760
    %1729 = vmatpush1.msra.mxu0 %v1728
    %1730 = vmatprep.subr.mxu0 0.0
    %v1731 = vand.u32 %v352, 4294901760
    %1732 = vmatpush1.msra.mxu0 %v1731
    %1733 = vmatprep.subr.mxu0 0.0
    %v1734 = vand.u32 %v353, 4294901760
    %1735 = vmatpush1.msra.mxu0 %v1734
    %1736 = vmatprep.subr.mxu0 0.0
    %v1737 = vand.u32 %v354, 4294901760
    %1738 = vmatpush1.msra.mxu0 %v1737
    %1739 = vmatprep.subr.mxu0 0.0
    %v1740 = vand.u32 %v355, 4294901760
    %1741 = vmatpush1.msra.mxu0 %v1740
    %1742 = vmatprep.subr.mxu0 0.0
    %v1743 = vand.u32 %v356, 4294901760
    %1744 = vmatpush1.msra.mxu0 %v1743
    %1745 = vmatprep.subr.mxu0 0.0
    %v1746 = vand.u32 %v357, 4294901760
    %1747 = vmatpush1.msra.mxu0 %v1746
    %1748 = vmatprep.subr.mxu0 0.0
    %v1749 = vand.u32 %v358, 4294901760
    %1750 = vmatpush1.msra.mxu0 %v1749
    %1751 = vmatprep.subr.mxu0 0.0
    %v1752 = vand.u32 %v359, 4294901760
    %1753 = vmatpush1.msra.mxu0 %v1752
    %1754 = vmatprep.subr.mxu0 0.0
    %v1755 = vand.u32 %v360, 4294901760
    %1756 = vmatpush1.msra.mxu0 %v1755
    %1757 = vmatprep.subr.mxu0 0.0
    %v1758 = vand.u32 %v361, 4294901760
    %1759 = vmatpush1.msra.mxu0 %v1758
    %1760 = vmatprep.subr.mxu0 0.0
    %v1761 = vand.u32 %v362, 4294901760
    %1762 = vmatpush1.msra.mxu0 %v1761
    %1763 = vmatprep.subr.mxu0 0.0
    %v1764 = vand.u32 %v363, 4294901760
    %1765 = vmatpush1.msra.mxu0 %v1764
    %1766 = vmatprep.subr.mxu0 0.0
    %v1767 = vand.u32 %v364, 4294901760
    %1768 = vmatpush1.msra.mxu0 %v1767
    %1769 = vmatprep.subr.mxu0 0.0
    %v1770 = vand.u32 %v365, 4294901760
    %1771 = vmatpush1.msra.mxu0 %v1770
    %1772 = vmatprep.subr.mxu0 0.0
    %v1773 = vand.u32 %v366, 4294901760
    %1774 = vmatpush1.msra.mxu0 %v1773
    %1775 = vmatprep.subr.mxu0 0.0
    %v1776 = vand.u32 %v367, 4294901760
    %1777 = vmatpush1.msra.mxu0 %v1776
    %1778 = vmatprep.subr.mxu0 0.0
    %v1779 = vand.u32 %v368, 4294901760
    %1780 = vmatpush1.msra.mxu0 %v1779
    %1781 = vmatprep.subr.mxu0 0.0
    %v1782 = vand.u32 %v369, 4294901760
    %1783 = vmatpush1.msra.mxu0 %v1782
    %1784 = vmatprep.subr.mxu0 0.0
    %v1785 = vand.u32 %v370, 4294901760
    %1786 = vmatpush1.msra.mxu0 %v1785
    %1787 = vmatprep.subr.mxu0 0.0
    %v1788 = vand.u32 %v371, 4294901760
    %1789 = vmatpush1.msra.mxu0 %v1788
    %1790 = vmatprep.subr.mxu0 0.0
    %v1791 = vand.u32 %v372, 4294901760
    %1792 = vmatpush1.msra.mxu0 %v1791
    %1793 = vmatprep.subr.mxu0 0.0
    %v1794 = vand.u32 %v373, 4294901760
    %1795 = vmatpush1.msra.mxu0 %v1794
    %1796 = vmatprep.subr.mxu0 0.0
    %v1797 = vand.u32 %v374, 4294901760
    %1798 = vmatpush1.msra.mxu0 %v1797
    %1799 = vmatprep.subr.mxu0 0.0
    %v1800 = vand.u32 %v375, 4294901760
    %1801 = vmatpush1.msra.mxu0 %v1800
    %1802 = vmatprep.subr.mxu0 0.0
    %v1803 = vand.u32 %v376, 4294901760
    %1804 = vmatpush1.msra.mxu0 %v1803
    %1805 = vmatprep.subr.mxu0 0.0
    %v1806 = vand.u32 %v377, 4294901760
    %1807 = vmatpush1.msra.mxu0 %v1806
    %1808 = vmatprep.subr.mxu0 0.0
    %v1809 = vand.u32 %v378, 4294901760
    %1810 = vmatpush1.msra.mxu0 %v1809
    %1811 = vmatprep.subr.mxu0 0.0
    %v1812 = vand.u32 %v379, 4294901760
    %1813 = vmatpush1.msra.mxu0 %v1812
    %1814 = vmatprep.subr.mxu0 0.0
    %v1815 = vand.u32 %v380, 4294901760
    %1816 = vmatpush1.msra.mxu0 %v1815
    %1817 = vmatprep.subr.mxu0 0.0
    %v1818 = vand.u32 %v381, 4294901760
    %1819 = vmatpush1.msra.mxu0 %v1818
    %1820 = vmatprep.subr.mxu0 0.0
    %v1821 = vand.u32 %v382, 4294901760
    %1822 = vmatpush1.msra.mxu0 %v1821
    %v1823 = vand.u32 %v318, 4294901760
    %v1824 = vsub.f32 %v318, %v1823
    %v1825 = vand.u32 %v1824, 4294901760
    %1826 = vmatprep.mubr.f32.mxu0 %v1825
    %v1827 = vand.u32 %v317, 4294901760
    %v1828 = vsub.f32 %v317, %v1827
    %v1829 = vand.u32 %v1828, 4294901760
    %1830 = vmatmul.mubr.f32.gmra.mrb[0].mxu0 %v1829
    %v1831 = vpop.f32.mrb[0].mxu0
    %v1832 = vadd.f32 %v1724, %v1831
    %v1833 = vpop.f32.mrb[0].mxu0
    %1834 = vdwg.mxu0
    %1835 = vmatprep.subr.mxu0 0.0
    %v1836 = vand.u32 %v351, 4294901760
    %v1837 = vsub.f32 %v351, %v1836
    %v1838 = vand.u32 %v1837, 4294901760
    %1839 = vmatpush1.msra.mxu0 %v1838
    %1840 = vmatprep.subr.mxu0 0.0
    %v1841 = vand.u32 %v352, 4294901760
    %v1842 = vsub.f32 %v352, %v1841
    %v1843 = vand.u32 %v1842, 4294901760
    %1844 = vmatpush1.msra.mxu0 %v1843
    %1845 = vmatprep.subr.mxu0 0.0
    %v1846 = vand.u32 %v353, 4294901760
    %v1847 = vsub.f32 %v353, %v1846
    %v1848 = vand.u32 %v1847, 4294901760
    %1849 = vmatpush1.msra.mxu0 %v1848
    %1850 = vmatprep.subr.mxu0 0.0
    %v1851 = vand.u32 %v354, 4294901760
    %v1852 = vsub.f32 %v354, %v1851
    %v1853 = vand.u32 %v1852, 4294901760
    %1854 = vmatpush1.msra.mxu0 %v1853
    %1855 = vmatprep.subr.mxu0 0.0
    %v1856 = vand.u32 %v355, 4294901760
    %v1857 = vsub.f32 %v355, %v1856
    %v1858 = vand.u32 %v1857, 4294901760
    %1859 = vmatpush1.msra.mxu0 %v1858
    %1860 = vmatprep.subr.mxu0 0.0
    %v1861 = vand.u32 %v356, 4294901760
    %v1862 = vsub.f32 %v356, %v1861
    %v1863 = vand.u32 %v1862, 4294901760
    %1864 = vmatpush1.msra.mxu0 %v1863
    %1865 = vmatprep.subr.mxu0 0.0
    %v1866 = vand.u32 %v357, 4294901760
    %v1867 = vsub.f32 %v357, %v1866
    %v1868 = vand.u32 %v1867, 4294901760
    %1869 = vmatpush1.msra.mxu0 %v1868
    %1870 = vmatprep.subr.mxu0 0.0
    %v1871 = vand.u32 %v358, 4294901760
    %v1872 = vsub.f32 %v358, %v1871
    %v1873 = vand.u32 %v1872, 4294901760
    %1874 = vmatpush1.msra.mxu0 %v1873
    %1875 = vmatprep.subr.mxu0 0.0
    %v1876 = vand.u32 %v359, 4294901760
    %v1877 = vsub.f32 %v359, %v1876
    %v1878 = vand.u32 %v1877, 4294901760
    %1879 = vmatpush1.msra.mxu0 %v1878
    %1880 = vmatprep.subr.mxu0 0.0
    %v1881 = vand.u32 %v360, 4294901760
    %v1882 = vsub.f32 %v360, %v1881
    %v1883 = vand.u32 %v1882, 4294901760
    %1884 = vmatpush1.msra.mxu0 %v1883
    %1885 = vmatprep.subr.mxu0 0.0
    %v1886 = vand.u32 %v361, 4294901760
    %v1887 = vsub.f32 %v361, %v1886
    %v1888 = vand.u32 %v1887, 4294901760
    %1889 = vmatpush1.msra.mxu0 %v1888
    %1890 = vmatprep.subr.mxu0 0.0
    %v1891 = vand.u32 %v362, 4294901760
    %v1892 = vsub.f32 %v362, %v1891
    %v1893 = vand.u32 %v1892, 4294901760
    %1894 = vmatpush1.msra.mxu0 %v1893
    %1895 = vmatprep.subr.mxu0 0.0
    %v1896 = vand.u32 %v363, 4294901760
    %v1897 = vsub.f32 %v363, %v1896
    %v1898 = vand.u32 %v1897, 4294901760
    %1899 = vmatpush1.msra.mxu0 %v1898
    %1900 = vmatprep.subr.mxu0 0.0
    %v1901 = vand.u32 %v364, 4294901760
    %v1902 = vsub.f32 %v364, %v1901
    %v1903 = vand.u32 %v1902, 4294901760
    %1904 = vmatpush1.msra.mxu0 %v1903
    %1905 = vmatprep.subr.mxu0 0.0
    %v1906 = vand.u32 %v365, 4294901760
    %v1907 = vsub.f32 %v365, %v1906
    %v1908 = vand.u32 %v1907, 4294901760
    %1909 = vmatpush1.msra.mxu0 %v1908
    %1910 = vmatprep.subr.mxu0 0.0
    %v1911 = vand.u32 %v366, 4294901760
    %v1912 = vsub.f32 %v366, %v1911
    %v1913 = vand.u32 %v1912, 4294901760
    %1914 = vmatpush1.msra.mxu0 %v1913
    %1915 = vmatprep.subr.mxu0 0.0
    %v1916 = vand.u32 %v367, 4294901760
    %v1917 = vsub.f32 %v367, %v1916
    %v1918 = vand.u32 %v1917, 4294901760
    %1919 = vmatpush1.msra.mxu0 %v1918
    %1920 = vmatprep.subr.mxu0 0.0
    %v1921 = vand.u32 %v368, 4294901760
    %v1922 = vsub.f32 %v368, %v1921
    %v1923 = vand.u32 %v1922, 4294901760
    %1924 = vmatpush1.msra.mxu0 %v1923
    %1925 = vmatprep.subr.mxu0 0.0
    %v1926 = vand.u32 %v369, 4294901760
    %v1927 = vsub.f32 %v369, %v1926
    %v1928 = vand.u32 %v1927, 4294901760
    %1929 = vmatpush1.msra.mxu0 %v1928
    %1930 = vmatprep.subr.mxu0 0.0
    %v1931 = vand.u32 %v370, 4294901760
    %v1932 = vsub.f32 %v370, %v1931
    %v1933 = vand.u32 %v1932, 4294901760
    %1934 = vmatpush1.msra.mxu0 %v1933
    %1935 = vmatprep.subr.mxu0 0.0
    %v1936 = vand.u32 %v371, 4294901760
    %v1937 = vsub.f32 %v371, %v1936
    %v1938 = vand.u32 %v1937, 4294901760
    %1939 = vmatpush1.msra.mxu0 %v1938
    %1940 = vmatprep.subr.mxu0 0.0
    %v1941 = vand.u32 %v372, 4294901760
    %v1942 = vsub.f32 %v372, %v1941
    %v1943 = vand.u32 %v1942, 4294901760
    %1944 = vmatpush1.msra.mxu0 %v1943
    %1945 = vmatprep.subr.mxu0 0.0
    %v1946 = vand.u32 %v373, 4294901760
    %v1947 = vsub.f32 %v373, %v1946
    %v1948 = vand.u32 %v1947, 4294901760
    %1949 = vmatpush1.msra.mxu0 %v1948
    %1950 = vmatprep.subr.mxu0 0.0
    %v1951 = vand.u32 %v374, 4294901760
    %v1952 = vsub.f32 %v374, %v1951
    %v1953 = vand.u32 %v1952, 4294901760
    %1954 = vmatpush1.msra.mxu0 %v1953
    %1955 = vmatprep.subr.mxu0 0.0
    %v1956 = vand.u32 %v375, 4294901760
    %v1957 = vsub.f32 %v375, %v1956
    %v1958 = vand.u32 %v1957, 4294901760
    %1959 = vmatpush1.msra.mxu0 %v1958
    %1960 = vmatprep.subr.mxu0 0.0
    %v1961 = vand.u32 %v376, 4294901760
    %v1962 = vsub.f32 %v376, %v1961
    %v1963 = vand.u32 %v1962, 4294901760
    %1964 = vmatpush1.msra.mxu0 %v1963
    %1965 = vmatprep.subr.mxu0 0.0
    %v1966 = vand.u32 %v377, 4294901760
    %v1967 = vsub.f32 %v377, %v1966
    %v1968 = vand.u32 %v1967, 4294901760
    %1969 = vmatpush1.msra.mxu0 %v1968
    %1970 = vmatprep.subr.mxu0 0.0
    %v1971 = vand.u32 %v378, 4294901760
    %v1972 = vsub.f32 %v378, %v1971
    %v1973 = vand.u32 %v1972, 4294901760
    %1974 = vmatpush1.msra.mxu0 %v1973
    %1975 = vmatprep.subr.mxu0 0.0
    %v1976 = vand.u32 %v379, 4294901760
    %v1977 = vsub.f32 %v379, %v1976
    %v1978 = vand.u32 %v1977, 4294901760
    %1979 = vmatpush1.msra.mxu0 %v1978
    %1980 = vmatprep.subr.mxu0 0.0
    %v1981 = vand.u32 %v380, 4294901760
    %v1982 = vsub.f32 %v380, %v1981
    %v1983 = vand.u32 %v1982, 4294901760
    %1984 = vmatpush1.msra.mxu0 %v1983
    %1985 = vmatprep.subr.mxu0 0.0
    %v1986 = vand.u32 %v381, 4294901760
    %v1987 = vsub.f32 %v381, %v1986
    %v1988 = vand.u32 %v1987, 4294901760
    %1989 = vmatpush1.msra.mxu0 %v1988
    %1990 = vmatprep.subr.mxu0 0.0
    %v1991 = vand.u32 %v382, 4294901760
    %v1992 = vsub.f32 %v382, %v1991
    %v1993 = vand.u32 %v1992, 4294901760
    %1994 = vmatpush1.msra.mxu0 %v1993
    %v1995 = vand.u32 %v318, 4294901760
    %1996 = vmatprep.mubr.f32.mxu0 %v1995
    %v1997 = vand.u32 %v317, 4294901760
    %1998 = vmatmul.mubr.f32.gmra.mrb[0].mxu0 %v1997
    %v1999 = vpop.f32.mrb[0].mxu0
    %v2000 = vadd.f32 %v1832, %v1999
    %v2001 = vpop.f32.mrb[0].mxu0
    %2002 = vdwg.mxu0
    %2003 = vmatprep.subr.mxu0 0.0
    %v2004 = vand.u32 %v351, 4294901760
    %2005 = vmatpush1.msra.mxu0 %v2004
    %2006 = vmatprep.subr.mxu0 0.0
    %v2007 = vand.u32 %v352, 4294901760
    %2008 = vmatpush1.msra.mxu0 %v2007
    %2009 = vmatprep.subr.mxu0 0.0
    %v2010 = vand.u32 %v353, 4294901760
    %2011 = vmatpush1.msra.mxu0 %v2010
    %2012 = vmatprep.subr.mxu0 0.0
    %v2013 = vand.u32 %v354, 4294901760
    %2014 = vmatpush1.msra.mxu0 %v2013
    %2015 = vmatprep.subr.mxu0 0.0
    %v2016 = vand.u32 %v355, 4294901760
    %2017 = vmatpush1.msra.mxu0 %v2016
    %2018 = vmatprep.subr.mxu0 0.0
    %v2019 = vand.u32 %v356, 4294901760
    %2020 = vmatpush1.msra.mxu0 %v2019
    %2021 = vmatprep.subr.mxu0 0.0
    %v2022 = vand.u32 %v357, 4294901760
    %2023 = vmatpush1.msra.mxu0 %v2022
    %2024 = vmatprep.subr.mxu0 0.0
    %v2025 = vand.u32 %v358, 4294901760
    %2026 = vmatpush1.msra.mxu0 %v2025
    %2027 = vmatprep.subr.mxu0 0.0
    %v2028 = vand.u32 %v359, 4294901760
    %2029 = vmatpush1.msra.mxu0 %v2028
    %2030 = vmatprep.subr.mxu0 0.0
    %v2031 = vand.u32 %v360, 4294901760
    %2032 = vmatpush1.msra.mxu0 %v2031
    %2033 = vmatprep.subr.mxu0 0.0
    %v2034 = vand.u32 %v361, 4294901760
    %2035 = vmatpush1.msra.mxu0 %v2034
    %2036 = vmatprep.subr.mxu0 0.0
    %v2037 = vand.u32 %v362, 4294901760
    %2038 = vmatpush1.msra.mxu0 %v2037
    %2039 = vmatprep.subr.mxu0 0.0
    %v2040 = vand.u32 %v363, 4294901760
    %2041 = vmatpush1.msra.mxu0 %v2040
    %2042 = vmatprep.subr.mxu0 0.0
    %v2043 = vand.u32 %v364, 4294901760
    %2044 = vmatpush1.msra.mxu0 %v2043
    %2045 = vmatprep.subr.mxu0 0.0
    %v2046 = vand.u32 %v365, 4294901760
    %2047 = vmatpush1.msra.mxu0 %v2046
    %2048 = vmatprep.subr.mxu0 0.0
    %v2049 = vand.u32 %v366, 4294901760
    %2050 = vmatpush1.msra.mxu0 %v2049
    %2051 = vmatprep.subr.mxu0 0.0
    %v2052 = vand.u32 %v367, 4294901760
    %2053 = vmatpush1.msra.mxu0 %v2052
    %2054 = vmatprep.subr.mxu0 0.0
    %v2055 = vand.u32 %v368, 4294901760
    %2056 = vmatpush1.msra.mxu0 %v2055
    %2057 = vmatprep.subr.mxu0 0.0
    %v2058 = vand.u32 %v369, 4294901760
    %2059 = vmatpush1.msra.mxu0 %v2058
    %2060 = vmatprep.subr.mxu0 0.0
    %v2061 = vand.u32 %v370, 4294901760
    %2062 = vmatpush1.msra.mxu0 %v2061
    %2063 = vmatprep.subr.mxu0 0.0
    %v2064 = vand.u32 %v371, 4294901760
    %2065 = vmatpush1.msra.mxu0 %v2064
    %2066 = vmatprep.subr.mxu0 0.0
    %v2067 = vand.u32 %v372, 4294901760
    %2068 = vmatpush1.msra.mxu0 %v2067
    %2069 = vmatprep.subr.mxu0 0.0
    %v2070 = vand.u32 %v373, 4294901760
    %2071 = vmatpush1.msra.mxu0 %v2070
    %2072 = vmatprep.subr.mxu0 0.0
    %v2073 = vand.u32 %v374, 4294901760
    %2074 = vmatpush1.msra.mxu0 %v2073
    %2075 = vmatprep.subr.mxu0 0.0
    %v2076 = vand.u32 %v375, 4294901760
    %2077 = vmatpush1.msra.mxu0 %v2076
    %2078 = vmatprep.subr.mxu0 0.0
    %v2079 = vand.u32 %v376, 4294901760
    %2080 = vmatpush1.msra.mxu0 %v2079
    %2081 = vmatprep.subr.mxu0 0.0
    %v2082 = vand.u32 %v377, 4294901760
    %2083 = vmatpush1.msra.mxu0 %v2082
    %2084 = vmatprep.subr.mxu0 0.0
    %v2085 = vand.u32 %v378, 4294901760
    %2086 = vmatpush1.msra.mxu0 %v2085
    %2087 = vmatprep.subr.mxu0 0.0
    %v2088 = vand.u32 %v379, 4294901760
    %2089 = vmatpush1.msra.mxu0 %v2088
    %2090 = vmatprep.subr.mxu0 0.0
    %v2091 = vand.u32 %v380, 4294901760
    %2092 = vmatpush1.msra.mxu0 %v2091
    %2093 = vmatprep.subr.mxu0 0.0
    %v2094 = vand.u32 %v381, 4294901760
    %2095 = vmatpush1.msra.mxu0 %v2094
    %2096 = vmatprep.subr.mxu0 0.0
    %v2097 = vand.u32 %v382, 4294901760
    %2098 = vmatpush1.msra.mxu0 %v2097
    %v2099 = vand.u32 %v318, 4294901760
    %2100 = vmatprep.mubr.f32.mxu0 %v2099
    %v2101 = vand.u32 %v317, 4294901760
    %2102 = vmatmul.mubr.f32.gmra.mrb[0].mxu0 %v2101
    %v2103 = vpop.f32.mrb[0].mxu0
    %v2104 = vadd.f32 %v2000, %v2103
    %v2105 = vpop.f32.mrb[0].mxu0
    %2106 = vdwg.mxu0
    %v2107 = vld [vmem:[%s3] sm:$0xf]
    %2109 = vset.pattern.permute.xlu0 4
    %2110 = vperm.xlu0 %2109, %v2107
    %v2111 = vpop.permute.xlu0 %2110
    %v2114 = vrot.slane %v2104, 4
    %v2116 = vmul.f32 %v2111, %v2114
    %v2117 = vld [vmem:[%s2] sm:$0x1]
    %2118 = vrot.lane.b32.xlu0 %v2114, 9
    %v2119 = vpop.permute.xlu0 %2118
    %v2120 = vlaneseq
    %v2121 = vshrl.u32 %v2120, 7
    %v2122 = vsub.s32 0, %v2121
    %v2123 = vrot.slane %v2117, %v2122
    %v2124 = vmul.f32 %v2123, %v2119
    %2125 = vset.pattern.permute.xlu0 0
    %2126 = vperm.xlu0 %2125, %v2107
    %v2127 = vpop.permute.xlu0 %2126
    %v2129 = vmul.f32 %v2127, %v2124
    %v2130 = vadd.f32 %v2116, %v2129
    %v2131 = vld [vmem:[%s2 + $0x1] sm:$0x1]
    %2132 = vrot.lane.b32.xlu0 %v2114, 8
    %v2133 = vpop.permute.xlu0 %2132
    %v2134 = vlaneseq
    %v2135 = vshrl.u32 %v2134, 7
    %v2136 = vsub.s32 0, %v2135
    %v2137 = vrot.slane %v2131, %v2136
    %v2138 = vmul.f32 %v2137, %v2133
    %2139 = vset.pattern.permute.xlu0 1
    %2140 = vperm.xlu0 %2139, %v2107
    %v2141 = vpop.permute.xlu0 %2140
    %v2143 = vmul.f32 %v2141, %v2138
    %v2144 = vadd.f32 %v2130, %v2143
    %v2145 = vld [vmem:[%s2 + $0x2] sm:$0x1]
    %2146 = vrot.lane.b32.xlu0 %v2114, 7
    %v2147 = vpop.permute.xlu0 %2146
    %v2148 = vlaneseq
    %v2149 = vshrl.u32 %v2148, 7
    %v2150 = vsub.s32 0, %v2149
    %v2151 = vrot.slane %v2145, %v2150
    %v2152 = vmul.f32 %v2151, %v2147
    %2153 = vset.pattern.permute.xlu0 2
    %2154 = vperm.xlu0 %2153, %v2107
    %v2155 = vpop.permute.xlu0 %2154
    %v2157 = vmul.f32 %v2155, %v2152
    %v2158 = vadd.f32 %v2144, %v2157
    %v2159 = vld [vmem:[%s2 + $0x3] sm:$0x1]
    %2160 = vrot.lane.b32.xlu0 %v2114, 1
    %v2161 = vpop.permute.xlu0 %2160
    %v2162 = vlaneseq
    %v2163 = vshrl.u32 %v2162, 7
    %v2164 = vsub.s32 0, %v2163
    %v2165 = vrot.slane %v2159, %v2164
    %v2166 = vmul.f32 %v2165, %v2161
    %2167 = vset.pattern.permute.xlu0 3
    %2168 = vperm.xlu0 %2167, %v2107
    %v2169 = vpop.permute.xlu0 %2168
    %v2171 = vmul.f32 %v2169, %v2166
    %v2172 = vadd.f32 %v2158, %v2171
    %v2173 = vld [vmem:[%s2 + $0x5] sm:$0x1]
    %2174 = vrot.lane.b32.xlu0 %v2114, 127
    %v2175 = vpop.permute.xlu0 %2174
    %v2176 = vlaneseq
    %v2177 = vshrl.u32 %v2176, 7
    %v2178 = vsub.s32 0, %v2177
    %v2179 = vrot.slane %v2173, %v2178
    %v2180 = vmul.f32 %v2179, %v2175
    %2181 = vset.pattern.permute.xlu0 5
    %2182 = vperm.xlu0 %2181, %v2107
    %v2183 = vpop.permute.xlu0 %2182
    %v2185 = vmul.f32 %v2183, %v2180
    %v2186 = vadd.f32 %v2172, %v2185
    %v2187 = vld [vmem:[%s2 + $0x6] sm:$0x1]
    %2188 = vrot.lane.b32.xlu0 %v2114, 121
    %v2189 = vpop.permute.xlu0 %2188
    %v2190 = vlaneseq
    %v2191 = vshrl.u32 %v2190, 7
    %v2192 = vsub.s32 0, %v2191
    %v2193 = vrot.slane %v2187, %v2192
    %v2194 = vmul.f32 %v2193, %v2189
    %2195 = vset.pattern.permute.xlu0 6
    %2196 = vperm.xlu0 %2195, %v2107
    %v2197 = vpop.permute.xlu0 %2196
    %v2199 = vmul.f32 %v2197, %v2194
    %v2200 = vadd.f32 %v2186, %v2199
    %v2201 = vld [vmem:[%s2 + $0x7] sm:$0x1]
    %2202 = vrot.lane.b32.xlu0 %v2114, 120
    %v2203 = vpop.permute.xlu0 %2202
    %v2204 = vlaneseq
    %v2205 = vshrl.u32 %v2204, 7
    %v2206 = vsub.s32 0, %v2205
    %v2207 = vrot.slane %v2201, %v2206
    %v2208 = vmul.f32 %v2207, %v2203
    %2209 = vset.pattern.permute.xlu0 7
    %2210 = vperm.xlu0 %2209, %v2107
    %v2211 = vpop.permute.xlu0 %2210
    %v2213 = vmul.f32 %v2211, %v2208
    %v2214 = vadd.f32 %v2200, %v2213
    %v2215 = vld [vmem:[%s2 + $0x8] sm:$0x1]
    %2216 = vrot.lane.b32.xlu0 %v2114, 119
    %v2217 = vpop.permute.xlu0 %2216
    %v2218 = vlaneseq
    %v2219 = vshrl.u32 %v2218, 7
    %v2220 = vsub.s32 0, %v2219
    %v2221 = vrot.slane %v2215, %v2220
    %v2222 = vmul.f32 %v2221, %v2217
    %2223 = vset.pattern.permute.xlu0 8
    %2224 = vperm.xlu0 %2223, %v2107
    %v2225 = vpop.permute.xlu0 %2224
    %v2227 = vmul.f32 %v2225, %v2222
    %v2228 = vadd.f32 %v2214, %v2227
    %v2229 = vld [vmem:[%s4] sm:$0xf]
    %2231 = vset.pattern.permute.xlu0 0
    %2232 = vperm.xlu0 %2231, %v2229
    %v2233 = vpop.permute.xlu0 %2232
    %v2235 = vadd.f32 %v2228, %v2233
    %v2236 = vmax.f32 %v2235, 0.0
    %v2237 = vld [vmem:[%s5] sm:$0xf]
    %2239 = vset.pattern.permute.xlu0 0
    %2240 = vperm.xlu0 %2239, %v2237
    %v2241 = vpop.permute.xlu0 %2240
    %v2243 = vlaneseq
    %v2244 = vshrl.u32 %v2243, 7
    %v2245 = vsub.s32 0, %v2244
    %v2246 = vrot.slane %v2236, %v2245
    %v2247 = vmul.f32 %v2241, %v2246
    %2248 = vset.pattern.permute.xlu0 1
    %2249 = vperm.xlu0 %2248, %v2237
    %v2250 = vpop.permute.xlu0 %2249
    %v2252 = vlaneseq
    %v2253 = vshrl.u32 %v2252, 7
    %v2254 = vsub.s32 1, %v2253
    %v2255 = vrot.slane %v2236, %v2254
    %v2256 = vmul.f32 %v2250, %v2255
    %v2257 = vadd.f32 %v2247, %v2256
    %2258 = vset.pattern.permute.xlu0 2
    %2259 = vperm.xlu0 %2258, %v2237
    %v2260 = vpop.permute.xlu0 %2259
    %v2262 = vlaneseq
    %v2263 = vshrl.u32 %v2262, 7
    %v2264 = vsub.s32 2, %v2263
    %v2265 = vrot.slane %v2236, %v2264
    %v2266 = vmul.f32 %v2260, %v2265
    %v2267 = vadd.f32 %v2257, %v2266
    %2268 = vset.pattern.permute.xlu0 3
    %2269 = vperm.xlu0 %2268, %v2237
    %v2270 = vpop.permute.xlu0 %2269
    %v2272 = vlaneseq
    %v2273 = vshrl.u32 %v2272, 7
    %v2274 = vsub.s32 3, %v2273
    %v2275 = vrot.slane %v2236, %v2274
    %v2276 = vmul.f32 %v2270, %v2275
    %v2277 = vadd.f32 %v2267, %v2276
    %v2278 = vld [vmem:[%s6] sm:$0xf]
    %2280 = vset.pattern.permute.xlu0 0
    %2281 = vperm.xlu0 %2280, %v2278
    %v2282 = vpop.permute.xlu0 %2281
    %v2284 = vadd.f32 %v2277, %v2282
    %v2285 = vmax.f32 %v2284, 0.0
    %v2286 = vadd.f32 %v2104, %v2285
    %2287 = vst [vmem:[#allocation8] sm:$0xf] %v2286
    // Predicated region
    $region46: #{tpu_custom_call.1} parent=1 // pred_check
      _
    $region47: #{tpu_custom_call.1} parent=1 // pred_check_branch
      %2289 = sbr.rel (0) target = $region49
    $region48: #{tpu_custom_call.1} parent=1 // pred_region
      %s2291 = ssub.s32 64, 64
      %2292 = vsyncadd [#allocation4], %s2291
      %s2294 = sshll.u32 [#allocation8], 4
      %s2295 = int_to_ptr.vmem [resolvable:$true] %s2294
      %2297 = dma.vmem_to_hbm [thread:$0]  %s2295, 64, %s8, [#allocation4]
    $region49: #{tpu_custom_call.1} parent=1 // pred_fallthru
      _
    // Predicated region
    $region50: #{tpu_custom_call.1} parent=1 // pred_check
      _
    $region51: #{tpu_custom_call.1} parent=1 // pred_check_branch
      %2299 = sbr.rel (0) target = $region53
    $region52: #{tpu_custom_call.1} parent=1 // pred_region
      %2300 = dma.done [#allocation4], 64
    $region53: #{tpu_custom_call.1} parent=1 // pred_fallthru
      _
    %2301 = vsyncpa [#allocation3], 1
    %2302 = vsyncpa [#allocation6], 1
    %2303 = vsyncpa [#allocation4], 1

</llo_original>
